<compile_context>
chip_gen: v6e
topology: v6e:2x2x1
jax: 0.10.0
libtpu: 0.0.40
codegen_flags: <defaults>
</compile_context>

<pallas_src>
import numpy as np
import jax
import jax.numpy as jnp
from jax import lax
from jax.experimental import pallas as pl
from jax.experimental.pallas import tpu as pltpu


def _round_up(x, m):
    return (x + m - 1) // m * m


def _pad_rows(t, mult=128):
    r = t.shape[0]
    rp = _round_up(r, mult)
    if rp == r:
        return t
    return jnp.pad(t, ((0, rp - r), (0, 0)))


# ----------------------------- Pallas kernel --------------------------------

def graph_creator_kernel(
    tok0_ref,   # (TE, S)    int32  token ids of value[0] strings
    tok2_ref,   # (TE, S)    int32  token ids of value[2] strings
    side_ref,   # (TE, 8)    int32  [node0, node2, edge_e, edge_o, edge_v, len0, len2, 0]
    ptab_ref,   # (Vp, D)    f32    token table with projection folded in (emb @ W.T)
    ntab_ref,   # (NNp, D)   f32    node-embedding table (row-padded)
    etab_ref,   # (NEp, D)   f32    edge-embedding table (row-padded)
    out_ref,    # (3, TE, D) f32    stacked node_edge_embedding slots
):
    TE, S = tok0_ref.shape
    Vp = ptab_ref.shape[0]
    NNp = ntab_ref.shape[0]
    NEp = etab_ref.shape[0]

    side = side_ref[...]
    node0_id = side[:, 0:1]
    node2_id = side[:, 1:2]
    edge_e_id = side[:, 2:3]
    edge_o_id = side[:, 3:4]
    edge_v_id = side[:, 4:5]
    len0 = side[:, 5:6]
    len2 = side[:, 6:7]

    iota_v = lax.broadcasted_iota(jnp.int32, (TE, Vp), 1)

    def masked_histogram(tok_ref, length):
        # hist[e, v] = sum_s mask[e, s] * 1[id[e, s] == v]; the binary prefix
        # mask is rebuilt from the row length, so padded token slots are zero.
        ids = tok_ref[...]                                       # (TE, S) int32
        hist = jnp.zeros((TE, Vp), jnp.float32)
        for s in range(S):                                       # S static & small
            ids_s = ids[:, s:s + 1]                              # (TE, 1)
            valid = length > s                                   # (TE, 1) prefix mask
            hist = hist + ((ids_s == iota_v) & valid).astype(jnp.float32)
        return hist

    ptab = ptab_ref[...]
    hist0 = masked_histogram(tok0_ref, len0)
    hist2 = masked_histogram(tok2_ref, len2)
    # sentence_emb = (sum_s m_s * proj(emb(id_s))) / count == (hist @ ptab) / count
    inv0 = 1.0 / jnp.maximum(len0.astype(jnp.float32), 1e-9)     # exact (no approx)
    inv2 = 1.0 / jnp.maximum(len2.astype(jnp.float32), 1e-9)
    val0 = jnp.dot(hist0, ptab, preferred_element_type=jnp.float32) * inv0
    val2 = jnp.dot(hist2, ptab, preferred_element_type=jnp.float32) * inv2

    # Node / edge embedding lookups as one-hot matmuls against the tiny tables.
    iota_n = lax.broadcasted_iota(jnp.int32, (TE, NNp), 1)
    iota_e = lax.broadcasted_iota(jnp.int32, (TE, NEp), 1)
    oh_n0 = (node0_id == iota_n).astype(jnp.float32)
    oh_n2 = (node2_id == iota_n).astype(jnp.float32)
    eh = ((edge_e_id == iota_e).astype(jnp.float32)
          + (edge_o_id == iota_e).astype(jnp.float32)
          + (edge_v_id == iota_e).astype(jnp.float32))
    ntab = ntab_ref[...]
    node0_emb = jnp.dot(oh_n0, ntab, preferred_element_type=jnp.float32)
    node2_emb = jnp.dot(oh_n2, ntab, preferred_element_type=jnp.float32)
    edge_sum = jnp.dot(eh, etab_ref[...], preferred_element_type=jnp.float32)

    third = jnp.float32(1.0 / 3.0)
    # (process_edge + process_order + process_value) / 3
    out_ref[0] = (node0_emb + val0) * third                      # slot 0 (src node)
    out_ref[1] = edge_sum * third                                # slot 1 (edge_attr)
    out_ref[2] = (node2_emb + val2) * third                      # slot 2 (dst node)


def node_edge_embedding_pallas(tok0_ids, tok2_ids, side_ids,
                               proj_tok_table, node_table, edge_table,
                               *, tile_e=512):
    """Returns the stacked slots, shape (3, E, D) float32."""
    E, S = tok0_ids.shape
    Vp, D = proj_tok_table.shape
    NNp = node_table.shape[0]
    NEp = edge_table.shape[0]
    SC = side_ids.shape[1]

    TE = min(tile_e, _round_up(E, 8))        # sublane-aligned tile over edges
    E_pad = _round_up(E, TE)

    def pad_e(x):
        if E_pad == E:
            return x
        return jnp.pad(x, [(0, E_pad - E)] + [(0, 0)] * (x.ndim - 1))

    tok0_p, tok2_p, side_p = pad_e(tok0_ids), pad_e(tok2_ids), pad_e(side_ids)

    grid = (E_pad // TE,)
    in_specs = [
        pl.BlockSpec((TE, S), lambda i: (i, 0)),       # tok0 ids
        pl.BlockSpec((TE, S), lambda i: (i, 0)),       # tok2 ids
        pl.BlockSpec((TE, SC), lambda i: (i, 0)),      # side ids / lengths
        pl.BlockSpec((Vp, D), lambda i: (0, 0)),       # projected token table (grid-invariant)
        pl.BlockSpec((NNp, D), lambda i: (0, 0)),      # node table (grid-invariant)
        pl.BlockSpec((NEp, D), lambda i: (0, 0)),      # edge table (grid-invariant)
    ]
    out_specs = pl.BlockSpec((3, TE, D), lambda i: (0, i, 0))

    flops = 2 * E_pad * D * (2 * Vp + 2 * NNp + NEp)
    bytes_accessed = ((tok0_p.size + tok2_p.size + side_p.size) * 4
                      + (Vp + NNp + NEp) * D * 4
                      + 3 * E_pad * D * 4)
    cost = pl.CostEstimate(flops=flops, transcendentals=0,
                           bytes_accessed=bytes_accessed)

    out = pl.pallas_call(
        graph_creator_kernel,
        out_shape=jax.ShapeDtypeStruct((3, E_pad, D), jnp.float32),
        grid=grid,
        in_specs=in_specs,
        out_specs=out_specs,
        compiler_params=pltpu.CompilerParams(
            dimension_semantics=("parallel",)),        # shard E tiles over TCs
        cost_estimate=cost,
    )(tok0_p, tok2_p, side_p, proj_tok_table, node_table, edge_table)

    if E_pad != E:
        out = out[:, :E, :]
    return out


# --------------------------- GraphCreator wrapper ----------------------------

class GraphCreatorJAX:
    """Deterministic JAX/Pallas port of GraphCreator (single graph)."""

    def __init__(self, num_nodes, num_edge, vocab_size, embedding_dim=128, seed=0):
        self.embedding_dim = embedding_dim
        k = jax.random.PRNGKey(seed)
        k1, k2, k3, k4 = jax.random.split(k, 4)
        self.node_embedding = jax.random.normal(k1, (num_nodes, embedding_dim), jnp.float32)
        self.edge_embedding = jax.random.normal(k2, (num_edge, embedding_dim), jnp.float32)
        self.tok_embedding = jax.random.normal(k3, (vocab_size, embedding_dim), jnp.float32)
        # nn.Linear(D, D, bias=False): y = x @ W.T
        self.proj_w = (jax.random.normal(k4, (embedding_dim, embedding_dim), jnp.float32)
                       / np.sqrt(embedding_dim))

        # Projection is exactly linear -> fold it into the token table once:
        #   sum_s m_s * proj(emb(id_s)) == hist @ (emb_table @ W.T)
        # TODO(synk): for vocab >> ~2K the in-kernel one-hot histogram stops
        # paying off; fall back to an outside gather or an in-kernel DMA row-gather.
        self.proj_tok_table = _pad_rows(self.tok_embedding @ self.proj_w.T)
        self.node_table_padded = _pad_rows(self.node_embedding)
        self.edge_table_padded = _pad_rows(self.edge_embedding)

    def forward(self, edges, orders, value_tok0, value_mask0,
                value_edge_ids, value_tok2, value_mask2):
        """edges / orders: int32 (E, 3); value_tok{0,2}: int32 (E, S) token ids;
        value_mask{0,2}: (E, S) binary prefix attention masks (HF right padding)."""
        D = self.embedding_dim
        E = int(edges.shape[0])

        # Prefix masks -> per-row token counts (tiny exact reduce on (E,S) ints).
        len0 = jnp.sum(value_mask0.astype(jnp.int32), axis=1)
        len2 = jnp.sum(value_mask2.astype(jnp.int32), axis=1)

        side = jnp.stack(
            [edges[:, 0], edges[:, 2], edges[:, 1], orders[:, 1],
             value_edge_ids, len0, len2, jnp.zeros((E,), jnp.int32)],
            axis=1).astype(jnp.int32)                             # (E, 8)

        slots = node_edge_embedding_pallas(
            value_tok0.astype(jnp.int32), value_tok2.astype(jnp.int32), side,
            self.proj_tok_table, self.node_table_padded, self.edge_table_padded)

        # ---- static graph structure (host; depends only on *input* indices,
        #      so it never blocks on device compute) -------------------------
        orders_np = np.asarray(orders)
        edge_index_raw = np.stack([orders_np[:, 0], orders_np[:, 2]], axis=0)  # (2, E)
        unique_nodes, compact = np.unique(edge_index_raw, return_inverse=True)
        compact = compact.reshape(2, -1).astype(np.int32)
        num_unique = int(unique_nodes.shape[0])

        # get_hetero_data equivalent (PyG not available — plain dict).
        # Deterministic "last write wins" per scatter (matches torch indexed
        # assignment), then dst (slot 2) overwrites src (slot 0) like the torch code.
        src_sel = np.full((num_unique,), -1, np.int64)
        src_sel[compact[0]] = np.arange(E)
        dst_sel = np.full((num_unique,), -1, np.int64)
        dst_sel[compact[1]] = np.arange(E)
        src_rows = np.nonzero(src_sel >= 0)[0]
        dst_rows = np.nonzero(dst_sel >= 0)[0]

        node_embs = jnp.zeros((num_unique, D), jnp.float32)
        node_embs = node_embs.at[jnp.asarray(src_rows)].set(
            slots[0][jnp.asarray(src_sel[src_rows])])
        node_embs = node_embs.at[jnp.asarray(dst_rows)].set(
            slots[2][jnp.asarray(dst_sel[dst_rows])])

        return {
            "edge_index": jnp.asarray(compact, jnp.int32),        # compact node ids
            "orig_node_ids": jnp.asarray(unique_nodes, jnp.int32),
            "edge_attr": slots[1],
            "x": node_embs,
            "num_nodes": num_unique,
            # Kept in the kernel's lane-dense (3, E, D) layout (slot k == torch
            # node_edge_embedding[:, k, :]) to avoid an extra HBM transpose pass.
            "node_edge_embedding": slots,
        }


# Pure-JAX reference in the ORIGINAL op order (gather -> project -> mask -> sum
# -> /count) to verify the fold-the-projection / one-hot-histogram identities.
def node_edge_embedding_ref(tok_table, proj_w, node_table, edge_table,
                            edges, orders, value_edge_ids,
                            tok0_ids, mask0, tok2_ids, mask2):
    def sent(ids, m):
        x = tok_table[ids]                                       # (E, S, D)
        y = jnp.einsum('esd,fd->esf', x, proj_w)                 # x @ W.T
        y = y * m[:, :, None]
        return y.sum(axis=1) / jnp.maximum(m.sum(axis=1, keepdims=True), 1e-9)
    s0 = sent(tok0_ids, mask0)
    s2 = sent(tok2_ids, mask2)
    slot0 = (node_table[edges[:, 0]] + s0) / 3.0
    slot1 = (edge_table[edges[:, 1]] + edge_table[orders[:, 1]]
             + edge_table[value_edge_ids]) / 3.0
    slot2 = (node_table[edges[:, 2]] + s2) / 3.0
    return jnp.stack([slot0, slot1, slot2], axis=0)              # (3, E, D)


if __name__ == "__main__":
    E, S, D = 8, 16, 128          # edges per graph, tokens per value string, emb dim
    NUM_NODE_TYPES, NUM_EDGE_TYPES, VOCAB = 32, 16, 64
    N_GRAPH_NODES = 10            # node ids used in edge_index

    gc = GraphCreatorJAX(NUM_NODE_TYPES, NUM_EDGE_TYPES, VOCAB, D, seed=0)

    key = jax.random.PRNGKey(0)
    ks = jax.random.split(key, 8)
    edges = jnp.stack([
        jax.random.randint(ks[0], (E,), 0, NUM_NODE_TYPES),
        jax.random.randint(ks[1], (E,), 0, NUM_EDGE_TYPES),
        jax.random.randint(ks[2], (E,), 0, NUM_NODE_TYPES)], axis=1).astype(jnp.int32)
    orders = jnp.stack([
        jax.random.randint(ks[3], (E,), 0, N_GRAPH_NODES),
        jax.random.randint(ks[4], (E,), 0, NUM_EDGE_TYPES),
        jax.random.randint(ks[5], (E,), 0, N_GRAPH_NODES)], axis=1).astype(jnp.int32)
    value_edge_ids = jax.random.randint(ks[6], (E,), 0, NUM_EDGE_TYPES).astype(jnp.int32)
    value_tok0 = jax.random.randint(ks[7], (E, S), 0, VOCAB).astype(jnp.int32)
    value_tok2 = jax.random.randint(jax.random.fold_in(key, 99), (E, S), 0, VOCAB).astype(jnp.int32)
    # variable-length prefix masks (at least 1 valid token per row)
    lens0 = np.asarray(jax.random.randint(jax.random.fold_in(key, 1), (E,), 1, S + 1))
    lens2 = np.asarray(jax.random.randint(jax.random.fold_in(key, 2), (E,), 1, S + 1))
    ar = np.arange(S)[None, :]
    value_mask0 = jnp.asarray((ar < lens0[:, None]).astype(np.float32))
    value_mask2 = jnp.asarray((ar < lens2[:, None]).astype(np.float32))

    out = gc.forward(edges, orders, value_tok0, value_mask0,
                     value_edge_ids, value_tok2, value_mask2)
    jax.block_until_ready(out["node_edge_embedding"])

    # sanity check: in-kernel histogram/one-hot lookups vs pure-JAX reference
    # in the original gather-then-project-then-pool order on the same inputs.
    ref = node_edge_embedding_ref(
        gc.tok_embedding, gc.proj_w, gc.node_embedding, gc.edge_embedding,
        edges, orders, value_edge_ids,
        value_tok0, value_mask0, value_tok2, value_mask2)
    np.testing.assert_allclose(np.asarray(out["node_edge_embedding"]),
                               np.asarray(ref), rtol=2e-3, atol=2e-3)

    print("KERNEL_OK")
</pallas_src>

<mosaic_0001>
module attributes {stable_mosaic.version = 11 : i64} {
  func.func @graph_creator_kernel(%arg0: i32, %arg1: memref<8x16xi32, #tpu.memory_space<vmem>>, %arg2: memref<8x16xi32, #tpu.memory_space<vmem>>, %arg3: memref<8x8xi32, #tpu.memory_space<vmem>>, %arg4: memref<128x128xf32, #tpu.memory_space<vmem>>, %arg5: memref<128x128xf32, #tpu.memory_space<vmem>>, %arg6: memref<128x128xf32, #tpu.memory_space<vmem>>, %arg7: memref<3x8x128xf32, #tpu.memory_space<vmem>>) attributes {dimension_semantics = [#tpu.dimension_semantics<parallel>], iteration_bounds = array<i64: 1>, scalar_prefetch = 0 : i64, scratch_operands = 0 : i64, tpu.core_type = #tpu.core_type<tc>, window_params = [{transform_indices = @transform_0, window_bounds = array<i64: 8, 16>}, {transform_indices = @transform_1, window_bounds = array<i64: 8, 16>}, {transform_indices = @transform_2, window_bounds = array<i64: 8, 8>}, {pipeline_mode = #tpu.pipeline_mode<synchronous>, transform_indices = @transform_3, window_bounds = array<i64: 128, 128>}, {pipeline_mode = #tpu.pipeline_mode<synchronous>, transform_indices = @transform_4, window_bounds = array<i64: 128, 128>}, {pipeline_mode = #tpu.pipeline_mode<synchronous>, transform_indices = @transform_5, window_bounds = array<i64: 128, 128>}, {transform_indices = @transform_6, window_bounds = array<i64: 3, 8, 128>}]} {
    %c0 = arith.constant 0 : index
    %c0_0 = arith.constant 0 : index
    %0 = vector.load %arg3[%c0, %c0_0] : memref<8x8xi32, #tpu.memory_space<vmem>>, vector<8x8xi32>
    %1 = vector.extract_strided_slice %0 {offsets = [0, 0], sizes = [8, 1], strides = [1, 1]} : vector<8x8xi32> to vector<8x1xi32>
    %2 = vector.extract_strided_slice %0 {offsets = [0, 1], sizes = [8, 1], strides = [1, 1]} : vector<8x8xi32> to vector<8x1xi32>
    %3 = vector.extract_strided_slice %0 {offsets = [0, 2], sizes = [8, 1], strides = [1, 1]} : vector<8x8xi32> to vector<8x1xi32>
    %4 = vector.extract_strided_slice %0 {offsets = [0, 3], sizes = [8, 1], strides = [1, 1]} : vector<8x8xi32> to vector<8x1xi32>
    %5 = vector.extract_strided_slice %0 {offsets = [0, 4], sizes = [8, 1], strides = [1, 1]} : vector<8x8xi32> to vector<8x1xi32>
    %6 = vector.extract_strided_slice %0 {offsets = [0, 5], sizes = [8, 1], strides = [1, 1]} : vector<8x8xi32> to vector<8x1xi32>
    %7 = vector.extract_strided_slice %0 {offsets = [0, 6], sizes = [8, 1], strides = [1, 1]} : vector<8x8xi32> to vector<8x1xi32>
    %8 = tpu.iota {dimensions = array<i32: 1>} : vector<8x128xi32>
    %c0_1 = arith.constant 0 : index
    %c0_2 = arith.constant 0 : index
    %9 = vector.load %arg4[%c0_1, %c0_2] : memref<128x128xf32, #tpu.memory_space<vmem>>, vector<128x128xf32>
    %c0_3 = arith.constant 0 : index
    %c0_4 = arith.constant 0 : index
    %10 = vector.load %arg1[%c0_3, %c0_4] : memref<8x16xi32, #tpu.memory_space<vmem>>, vector<8x16xi32>
    %cst = arith.constant 0.000000e+00 : f32
    %11 = vector.broadcast %cst : f32 to vector<8x128xf32>
    %12 = vector.extract_strided_slice %10 {offsets = [0, 0], sizes = [8, 1], strides = [1, 1]} : vector<8x16xi32> to vector<8x1xi32>
    %c0_i32 = arith.constant 0 : i32
    %13 = vector.broadcast %c0_i32 : i32 to vector<8x1xi32>
    %14 = arith.cmpi sgt, %6, %13 : vector<8x1xi32>
    %15 = vector.broadcast %12 : vector<8x1xi32> to vector<8x128xi32>
    %16 = arith.cmpi eq, %15, %8 : vector<8x128xi32>
    %17 = vector.broadcast %14 : vector<8x1xi1> to vector<8x128xi1>
    %18 = arith.andi %16, %17 : vector<8x128xi1>
    %19 = arith.extui %18 : vector<8x128xi1> to vector<8x128xi32>
    %20 = arith.sitofp %19 : vector<8x128xi32> to vector<8x128xf32>
    %21 = arith.addf %11, %20 : vector<8x128xf32>
    %22 = vector.extract_strided_slice %10 {offsets = [0, 1], sizes = [8, 1], strides = [1, 1]} : vector<8x16xi32> to vector<8x1xi32>
    %c1_i32 = arith.constant 1 : i32
    %23 = vector.broadcast %c1_i32 : i32 to vector<8x1xi32>
    %24 = arith.cmpi sgt, %6, %23 : vector<8x1xi32>
    %25 = vector.broadcast %22 : vector<8x1xi32> to vector<8x128xi32>
    %26 = arith.cmpi eq, %25, %8 : vector<8x128xi32>
    %27 = vector.broadcast %24 : vector<8x1xi1> to vector<8x128xi1>
    %28 = arith.andi %26, %27 : vector<8x128xi1>
    %29 = arith.extui %28 : vector<8x128xi1> to vector<8x128xi32>
    %30 = arith.sitofp %29 : vector<8x128xi32> to vector<8x128xf32>
    %31 = arith.addf %21, %30 : vector<8x128xf32>
    %32 = vector.extract_strided_slice %10 {offsets = [0, 2], sizes = [8, 1], strides = [1, 1]} : vector<8x16xi32> to vector<8x1xi32>
    %c2_i32 = arith.constant 2 : i32
    %33 = vector.broadcast %c2_i32 : i32 to vector<8x1xi32>
    %34 = arith.cmpi sgt, %6, %33 : vector<8x1xi32>
    %35 = vector.broadcast %32 : vector<8x1xi32> to vector<8x128xi32>
    %36 = arith.cmpi eq, %35, %8 : vector<8x128xi32>
    %37 = vector.broadcast %34 : vector<8x1xi1> to vector<8x128xi1>
    %38 = arith.andi %36, %37 : vector<8x128xi1>
    %39 = arith.extui %38 : vector<8x128xi1> to vector<8x128xi32>
    %40 = arith.sitofp %39 : vector<8x128xi32> to vector<8x128xf32>
    %41 = arith.addf %31, %40 : vector<8x128xf32>
    %42 = vector.extract_strided_slice %10 {offsets = [0, 3], sizes = [8, 1], strides = [1, 1]} : vector<8x16xi32> to vector<8x1xi32>
    %c3_i32 = arith.constant 3 : i32
    %43 = vector.broadcast %c3_i32 : i32 to vector<8x1xi32>
    %44 = arith.cmpi sgt, %6, %43 : vector<8x1xi32>
    %45 = vector.broadcast %42 : vector<8x1xi32> to vector<8x128xi32>
    %46 = arith.cmpi eq, %45, %8 : vector<8x128xi32>
    %47 = vector.broadcast %44 : vector<8x1xi1> to vector<8x128xi1>
    %48 = arith.andi %46, %47 : vector<8x128xi1>
    %49 = arith.extui %48 : vector<8x128xi1> to vector<8x128xi32>
    %50 = arith.sitofp %49 : vector<8x128xi32> to vector<8x128xf32>
    %51 = arith.addf %41, %50 : vector<8x128xf32>
    %52 = vector.extract_strided_slice %10 {offsets = [0, 4], sizes = [8, 1], strides = [1, 1]} : vector<8x16xi32> to vector<8x1xi32>
    %c4_i32 = arith.constant 4 : i32
    %53 = vector.broadcast %c4_i32 : i32 to vector<8x1xi32>
    %54 = arith.cmpi sgt, %6, %53 : vector<8x1xi32>
    %55 = vector.broadcast %52 : vector<8x1xi32> to vector<8x128xi32>
    %56 = arith.cmpi eq, %55, %8 : vector<8x128xi32>
    %57 = vector.broadcast %54 : vector<8x1xi1> to vector<8x128xi1>
    %58 = arith.andi %56, %57 : vector<8x128xi1>
    %59 = arith.extui %58 : vector<8x128xi1> to vector<8x128xi32>
    %60 = arith.sitofp %59 : vector<8x128xi32> to vector<8x128xf32>
    %61 = arith.addf %51, %60 : vector<8x128xf32>
    %62 = vector.extract_strided_slice %10 {offsets = [0, 5], sizes = [8, 1], strides = [1, 1]} : vector<8x16xi32> to vector<8x1xi32>
    %c5_i32 = arith.constant 5 : i32
    %63 = vector.broadcast %c5_i32 : i32 to vector<8x1xi32>
    %64 = arith.cmpi sgt, %6, %63 : vector<8x1xi32>
    %65 = vector.broadcast %62 : vector<8x1xi32> to vector<8x128xi32>
    %66 = arith.cmpi eq, %65, %8 : vector<8x128xi32>
    %67 = vector.broadcast %64 : vector<8x1xi1> to vector<8x128xi1>
    %68 = arith.andi %66, %67 : vector<8x128xi1>
    %69 = arith.extui %68 : vector<8x128xi1> to vector<8x128xi32>
    %70 = arith.sitofp %69 : vector<8x128xi32> to vector<8x128xf32>
    %71 = arith.addf %61, %70 : vector<8x128xf32>
    %72 = vector.extract_strided_slice %10 {offsets = [0, 6], sizes = [8, 1], strides = [1, 1]} : vector<8x16xi32> to vector<8x1xi32>
    %c6_i32 = arith.constant 6 : i32
    %73 = vector.broadcast %c6_i32 : i32 to vector<8x1xi32>
    %74 = arith.cmpi sgt, %6, %73 : vector<8x1xi32>
    %75 = vector.broadcast %72 : vector<8x1xi32> to vector<8x128xi32>
    %76 = arith.cmpi eq, %75, %8 : vector<8x128xi32>
    %77 = vector.broadcast %74 : vector<8x1xi1> to vector<8x128xi1>
    %78 = arith.andi %76, %77 : vector<8x128xi1>
    %79 = arith.extui %78 : vector<8x128xi1> to vector<8x128xi32>
    %80 = arith.sitofp %79 : vector<8x128xi32> to vector<8x128xf32>
    %81 = arith.addf %71, %80 : vector<8x128xf32>
    %82 = vector.extract_strided_slice %10 {offsets = [0, 7], sizes = [8, 1], strides = [1, 1]} : vector<8x16xi32> to vector<8x1xi32>
    %c7_i32 = arith.constant 7 : i32
    %83 = vector.broadcast %c7_i32 : i32 to vector<8x1xi32>
    %84 = arith.cmpi sgt, %6, %83 : vector<8x1xi32>
    %85 = vector.broadcast %82 : vector<8x1xi32> to vector<8x128xi32>
    %86 = arith.cmpi eq, %85, %8 : vector<8x128xi32>
    %87 = vector.broadcast %84 : vector<8x1xi1> to vector<8x128xi1>
    %88 = arith.andi %86, %87 : vector<8x128xi1>
    %89 = arith.extui %88 : vector<8x128xi1> to vector<8x128xi32>
    %90 = arith.sitofp %89 : vector<8x128xi32> to vector<8x128xf32>
    %91 = arith.addf %81, %90 : vector<8x128xf32>
    %92 = vector.extract_strided_slice %10 {offsets = [0, 8], sizes = [8, 1], strides = [1, 1]} : vector<8x16xi32> to vector<8x1xi32>
    %c8_i32 = arith.constant 8 : i32
    %93 = vector.broadcast %c8_i32 : i32 to vector<8x1xi32>
    %94 = arith.cmpi sgt, %6, %93 : vector<8x1xi32>
    %95 = vector.broadcast %92 : vector<8x1xi32> to vector<8x128xi32>
    %96 = arith.cmpi eq, %95, %8 : vector<8x128xi32>
    %97 = vector.broadcast %94 : vector<8x1xi1> to vector<8x128xi1>
    %98 = arith.andi %96, %97 : vector<8x128xi1>
    %99 = arith.extui %98 : vector<8x128xi1> to vector<8x128xi32>
    %100 = arith.sitofp %99 : vector<8x128xi32> to vector<8x128xf32>
    %101 = arith.addf %91, %100 : vector<8x128xf32>
    %102 = vector.extract_strided_slice %10 {offsets = [0, 9], sizes = [8, 1], strides = [1, 1]} : vector<8x16xi32> to vector<8x1xi32>
    %c9_i32 = arith.constant 9 : i32
    %103 = vector.broadcast %c9_i32 : i32 to vector<8x1xi32>
    %104 = arith.cmpi sgt, %6, %103 : vector<8x1xi32>
    %105 = vector.broadcast %102 : vector<8x1xi32> to vector<8x128xi32>
    %106 = arith.cmpi eq, %105, %8 : vector<8x128xi32>
    %107 = vector.broadcast %104 : vector<8x1xi1> to vector<8x128xi1>
    %108 = arith.andi %106, %107 : vector<8x128xi1>
    %109 = arith.extui %108 : vector<8x128xi1> to vector<8x128xi32>
    %110 = arith.sitofp %109 : vector<8x128xi32> to vector<8x128xf32>
    %111 = arith.addf %101, %110 : vector<8x128xf32>
    %112 = vector.extract_strided_slice %10 {offsets = [0, 10], sizes = [8, 1], strides = [1, 1]} : vector<8x16xi32> to vector<8x1xi32>
    %c10_i32 = arith.constant 10 : i32
    %113 = vector.broadcast %c10_i32 : i32 to vector<8x1xi32>
    %114 = arith.cmpi sgt, %6, %113 : vector<8x1xi32>
    %115 = vector.broadcast %112 : vector<8x1xi32> to vector<8x128xi32>
    %116 = arith.cmpi eq, %115, %8 : vector<8x128xi32>
    %117 = vector.broadcast %114 : vector<8x1xi1> to vector<8x128xi1>
    %118 = arith.andi %116, %117 : vector<8x128xi1>
    %119 = arith.extui %118 : vector<8x128xi1> to vector<8x128xi32>
    %120 = arith.sitofp %119 : vector<8x128xi32> to vector<8x128xf32>
    %121 = arith.addf %111, %120 : vector<8x128xf32>
    %122 = vector.extract_strided_slice %10 {offsets = [0, 11], sizes = [8, 1], strides = [1, 1]} : vector<8x16xi32> to vector<8x1xi32>
    %c11_i32 = arith.constant 11 : i32
    %123 = vector.broadcast %c11_i32 : i32 to vector<8x1xi32>
    %124 = arith.cmpi sgt, %6, %123 : vector<8x1xi32>
    %125 = vector.broadcast %122 : vector<8x1xi32> to vector<8x128xi32>
    %126 = arith.cmpi eq, %125, %8 : vector<8x128xi32>
    %127 = vector.broadcast %124 : vector<8x1xi1> to vector<8x128xi1>
    %128 = arith.andi %126, %127 : vector<8x128xi1>
    %129 = arith.extui %128 : vector<8x128xi1> to vector<8x128xi32>
    %130 = arith.sitofp %129 : vector<8x128xi32> to vector<8x128xf32>
    %131 = arith.addf %121, %130 : vector<8x128xf32>
    %132 = vector.extract_strided_slice %10 {offsets = [0, 12], sizes = [8, 1], strides = [1, 1]} : vector<8x16xi32> to vector<8x1xi32>
    %c12_i32 = arith.constant 12 : i32
    %133 = vector.broadcast %c12_i32 : i32 to vector<8x1xi32>
    %134 = arith.cmpi sgt, %6, %133 : vector<8x1xi32>
    %135 = vector.broadcast %132 : vector<8x1xi32> to vector<8x128xi32>
    %136 = arith.cmpi eq, %135, %8 : vector<8x128xi32>
    %137 = vector.broadcast %134 : vector<8x1xi1> to vector<8x128xi1>
    %138 = arith.andi %136, %137 : vector<8x128xi1>
    %139 = arith.extui %138 : vector<8x128xi1> to vector<8x128xi32>
    %140 = arith.sitofp %139 : vector<8x128xi32> to vector<8x128xf32>
    %141 = arith.addf %131, %140 : vector<8x128xf32>
    %142 = vector.extract_strided_slice %10 {offsets = [0, 13], sizes = [8, 1], strides = [1, 1]} : vector<8x16xi32> to vector<8x1xi32>
    %c13_i32 = arith.constant 13 : i32
    %143 = vector.broadcast %c13_i32 : i32 to vector<8x1xi32>
    %144 = arith.cmpi sgt, %6, %143 : vector<8x1xi32>
    %145 = vector.broadcast %142 : vector<8x1xi32> to vector<8x128xi32>
    %146 = arith.cmpi eq, %145, %8 : vector<8x128xi32>
    %147 = vector.broadcast %144 : vector<8x1xi1> to vector<8x128xi1>
    %148 = arith.andi %146, %147 : vector<8x128xi1>
    %149 = arith.extui %148 : vector<8x128xi1> to vector<8x128xi32>
    %150 = arith.sitofp %149 : vector<8x128xi32> to vector<8x128xf32>
    %151 = arith.addf %141, %150 : vector<8x128xf32>
    %152 = vector.extract_strided_slice %10 {offsets = [0, 14], sizes = [8, 1], strides = [1, 1]} : vector<8x16xi32> to vector<8x1xi32>
    %c14_i32 = arith.constant 14 : i32
    %153 = vector.broadcast %c14_i32 : i32 to vector<8x1xi32>
    %154 = arith.cmpi sgt, %6, %153 : vector<8x1xi32>
    %155 = vector.broadcast %152 : vector<8x1xi32> to vector<8x128xi32>
    %156 = arith.cmpi eq, %155, %8 : vector<8x128xi32>
    %157 = vector.broadcast %154 : vector<8x1xi1> to vector<8x128xi1>
    %158 = arith.andi %156, %157 : vector<8x128xi1>
    %159 = arith.extui %158 : vector<8x128xi1> to vector<8x128xi32>
    %160 = arith.sitofp %159 : vector<8x128xi32> to vector<8x128xf32>
    %161 = arith.addf %151, %160 : vector<8x128xf32>
    %162 = vector.extract_strided_slice %10 {offsets = [0, 15], sizes = [8, 1], strides = [1, 1]} : vector<8x16xi32> to vector<8x1xi32>
    %c15_i32 = arith.constant 15 : i32
    %163 = vector.broadcast %c15_i32 : i32 to vector<8x1xi32>
    %164 = arith.cmpi sgt, %6, %163 : vector<8x1xi32>
    %165 = vector.broadcast %162 : vector<8x1xi32> to vector<8x128xi32>
    %166 = arith.cmpi eq, %165, %8 : vector<8x128xi32>
    %167 = vector.broadcast %164 : vector<8x1xi1> to vector<8x128xi1>
    %168 = arith.andi %166, %167 : vector<8x128xi1>
    %169 = arith.extui %168 : vector<8x128xi1> to vector<8x128xi32>
    %170 = arith.sitofp %169 : vector<8x128xi32> to vector<8x128xf32>
    %171 = arith.addf %161, %170 : vector<8x128xf32>
    %c0_5 = arith.constant 0 : index
    %c0_6 = arith.constant 0 : index
    %172 = vector.load %arg2[%c0_5, %c0_6] : memref<8x16xi32, #tpu.memory_space<vmem>>, vector<8x16xi32>
    %cst_7 = arith.constant 0.000000e+00 : f32
    %173 = vector.broadcast %cst_7 : f32 to vector<8x128xf32>
    %174 = vector.extract_strided_slice %172 {offsets = [0, 0], sizes = [8, 1], strides = [1, 1]} : vector<8x16xi32> to vector<8x1xi32>
    %c0_i32_8 = arith.constant 0 : i32
    %175 = vector.broadcast %c0_i32_8 : i32 to vector<8x1xi32>
    %176 = arith.cmpi sgt, %7, %175 : vector<8x1xi32>
    %177 = vector.broadcast %174 : vector<8x1xi32> to vector<8x128xi32>
    %178 = arith.cmpi eq, %177, %8 : vector<8x128xi32>
    %179 = vector.broadcast %176 : vector<8x1xi1> to vector<8x128xi1>
    %180 = arith.andi %178, %179 : vector<8x128xi1>
    %181 = arith.extui %180 : vector<8x128xi1> to vector<8x128xi32>
    %182 = arith.sitofp %181 : vector<8x128xi32> to vector<8x128xf32>
    %183 = arith.addf %173, %182 : vector<8x128xf32>
    %184 = vector.extract_strided_slice %172 {offsets = [0, 1], sizes = [8, 1], strides = [1, 1]} : vector<8x16xi32> to vector<8x1xi32>
    %c1_i32_9 = arith.constant 1 : i32
    %185 = vector.broadcast %c1_i32_9 : i32 to vector<8x1xi32>
    %186 = arith.cmpi sgt, %7, %185 : vector<8x1xi32>
    %187 = vector.broadcast %184 : vector<8x1xi32> to vector<8x128xi32>
    %188 = arith.cmpi eq, %187, %8 : vector<8x128xi32>
    %189 = vector.broadcast %186 : vector<8x1xi1> to vector<8x128xi1>
    %190 = arith.andi %188, %189 : vector<8x128xi1>
    %191 = arith.extui %190 : vector<8x128xi1> to vector<8x128xi32>
    %192 = arith.sitofp %191 : vector<8x128xi32> to vector<8x128xf32>
    %193 = arith.addf %183, %192 : vector<8x128xf32>
    %194 = vector.extract_strided_slice %172 {offsets = [0, 2], sizes = [8, 1], strides = [1, 1]} : vector<8x16xi32> to vector<8x1xi32>
    %c2_i32_10 = arith.constant 2 : i32
    %195 = vector.broadcast %c2_i32_10 : i32 to vector<8x1xi32>
    %196 = arith.cmpi sgt, %7, %195 : vector<8x1xi32>
    %197 = vector.broadcast %194 : vector<8x1xi32> to vector<8x128xi32>
    %198 = arith.cmpi eq, %197, %8 : vector<8x128xi32>
    %199 = vector.broadcast %196 : vector<8x1xi1> to vector<8x128xi1>
    %200 = arith.andi %198, %199 : vector<8x128xi1>
    %201 = arith.extui %200 : vector<8x128xi1> to vector<8x128xi32>
    %202 = arith.sitofp %201 : vector<8x128xi32> to vector<8x128xf32>
    %203 = arith.addf %193, %202 : vector<8x128xf32>
    %204 = vector.extract_strided_slice %172 {offsets = [0, 3], sizes = [8, 1], strides = [1, 1]} : vector<8x16xi32> to vector<8x1xi32>
    %c3_i32_11 = arith.constant 3 : i32
    %205 = vector.broadcast %c3_i32_11 : i32 to vector<8x1xi32>
    %206 = arith.cmpi sgt, %7, %205 : vector<8x1xi32>
    %207 = vector.broadcast %204 : vector<8x1xi32> to vector<8x128xi32>
    %208 = arith.cmpi eq, %207, %8 : vector<8x128xi32>
    %209 = vector.broadcast %206 : vector<8x1xi1> to vector<8x128xi1>
    %210 = arith.andi %208, %209 : vector<8x128xi1>
    %211 = arith.extui %210 : vector<8x128xi1> to vector<8x128xi32>
    %212 = arith.sitofp %211 : vector<8x128xi32> to vector<8x128xf32>
    %213 = arith.addf %203, %212 : vector<8x128xf32>
    %214 = vector.extract_strided_slice %172 {offsets = [0, 4], sizes = [8, 1], strides = [1, 1]} : vector<8x16xi32> to vector<8x1xi32>
    %c4_i32_12 = arith.constant 4 : i32
    %215 = vector.broadcast %c4_i32_12 : i32 to vector<8x1xi32>
    %216 = arith.cmpi sgt, %7, %215 : vector<8x1xi32>
    %217 = vector.broadcast %214 : vector<8x1xi32> to vector<8x128xi32>
    %218 = arith.cmpi eq, %217, %8 : vector<8x128xi32>
    %219 = vector.broadcast %216 : vector<8x1xi1> to vector<8x128xi1>
    %220 = arith.andi %218, %219 : vector<8x128xi1>
    %221 = arith.extui %220 : vector<8x128xi1> to vector<8x128xi32>
    %222 = arith.sitofp %221 : vector<8x128xi32> to vector<8x128xf32>
    %223 = arith.addf %213, %222 : vector<8x128xf32>
    %224 = vector.extract_strided_slice %172 {offsets = [0, 5], sizes = [8, 1], strides = [1, 1]} : vector<8x16xi32> to vector<8x1xi32>
    %c5_i32_13 = arith.constant 5 : i32
    %225 = vector.broadcast %c5_i32_13 : i32 to vector<8x1xi32>
    %226 = arith.cmpi sgt, %7, %225 : vector<8x1xi32>
    %227 = vector.broadcast %224 : vector<8x1xi32> to vector<8x128xi32>
    %228 = arith.cmpi eq, %227, %8 : vector<8x128xi32>
    %229 = vector.broadcast %226 : vector<8x1xi1> to vector<8x128xi1>
    %230 = arith.andi %228, %229 : vector<8x128xi1>
    %231 = arith.extui %230 : vector<8x128xi1> to vector<8x128xi32>
    %232 = arith.sitofp %231 : vector<8x128xi32> to vector<8x128xf32>
    %233 = arith.addf %223, %232 : vector<8x128xf32>
    %234 = vector.extract_strided_slice %172 {offsets = [0, 6], sizes = [8, 1], strides = [1, 1]} : vector<8x16xi32> to vector<8x1xi32>
    %c6_i32_14 = arith.constant 6 : i32
    %235 = vector.broadcast %c6_i32_14 : i32 to vector<8x1xi32>
    %236 = arith.cmpi sgt, %7, %235 : vector<8x1xi32>
    %237 = vector.broadcast %234 : vector<8x1xi32> to vector<8x128xi32>
    %238 = arith.cmpi eq, %237, %8 : vector<8x128xi32>
    %239 = vector.broadcast %236 : vector<8x1xi1> to vector<8x128xi1>
    %240 = arith.andi %238, %239 : vector<8x128xi1>
    %241 = arith.extui %240 : vector<8x128xi1> to vector<8x128xi32>
    %242 = arith.sitofp %241 : vector<8x128xi32> to vector<8x128xf32>
    %243 = arith.addf %233, %242 : vector<8x128xf32>
    %244 = vector.extract_strided_slice %172 {offsets = [0, 7], sizes = [8, 1], strides = [1, 1]} : vector<8x16xi32> to vector<8x1xi32>
    %c7_i32_15 = arith.constant 7 : i32
    %245 = vector.broadcast %c7_i32_15 : i32 to vector<8x1xi32>
    %246 = arith.cmpi sgt, %7, %245 : vector<8x1xi32>
    %247 = vector.broadcast %244 : vector<8x1xi32> to vector<8x128xi32>
    %248 = arith.cmpi eq, %247, %8 : vector<8x128xi32>
    %249 = vector.broadcast %246 : vector<8x1xi1> to vector<8x128xi1>
    %250 = arith.andi %248, %249 : vector<8x128xi1>
    %251 = arith.extui %250 : vector<8x128xi1> to vector<8x128xi32>
    %252 = arith.sitofp %251 : vector<8x128xi32> to vector<8x128xf32>
    %253 = arith.addf %243, %252 : vector<8x128xf32>
    %254 = vector.extract_strided_slice %172 {offsets = [0, 8], sizes = [8, 1], strides = [1, 1]} : vector<8x16xi32> to vector<8x1xi32>
    %c8_i32_16 = arith.constant 8 : i32
    %255 = vector.broadcast %c8_i32_16 : i32 to vector<8x1xi32>
    %256 = arith.cmpi sgt, %7, %255 : vector<8x1xi32>
    %257 = vector.broadcast %254 : vector<8x1xi32> to vector<8x128xi32>
    %258 = arith.cmpi eq, %257, %8 : vector<8x128xi32>
    %259 = vector.broadcast %256 : vector<8x1xi1> to vector<8x128xi1>
    %260 = arith.andi %258, %259 : vector<8x128xi1>
    %261 = arith.extui %260 : vector<8x128xi1> to vector<8x128xi32>
    %262 = arith.sitofp %261 : vector<8x128xi32> to vector<8x128xf32>
    %263 = arith.addf %253, %262 : vector<8x128xf32>
    %264 = vector.extract_strided_slice %172 {offsets = [0, 9], sizes = [8, 1], strides = [1, 1]} : vector<8x16xi32> to vector<8x1xi32>
    %c9_i32_17 = arith.constant 9 : i32
    %265 = vector.broadcast %c9_i32_17 : i32 to vector<8x1xi32>
    %266 = arith.cmpi sgt, %7, %265 : vector<8x1xi32>
    %267 = vector.broadcast %264 : vector<8x1xi32> to vector<8x128xi32>
    %268 = arith.cmpi eq, %267, %8 : vector<8x128xi32>
    %269 = vector.broadcast %266 : vector<8x1xi1> to vector<8x128xi1>
    %270 = arith.andi %268, %269 : vector<8x128xi1>
    %271 = arith.extui %270 : vector<8x128xi1> to vector<8x128xi32>
    %272 = arith.sitofp %271 : vector<8x128xi32> to vector<8x128xf32>
    %273 = arith.addf %263, %272 : vector<8x128xf32>
    %274 = vector.extract_strided_slice %172 {offsets = [0, 10], sizes = [8, 1], strides = [1, 1]} : vector<8x16xi32> to vector<8x1xi32>
    %c10_i32_18 = arith.constant 10 : i32
    %275 = vector.broadcast %c10_i32_18 : i32 to vector<8x1xi32>
    %276 = arith.cmpi sgt, %7, %275 : vector<8x1xi32>
    %277 = vector.broadcast %274 : vector<8x1xi32> to vector<8x128xi32>
    %278 = arith.cmpi eq, %277, %8 : vector<8x128xi32>
    %279 = vector.broadcast %276 : vector<8x1xi1> to vector<8x128xi1>
    %280 = arith.andi %278, %279 : vector<8x128xi1>
    %281 = arith.extui %280 : vector<8x128xi1> to vector<8x128xi32>
    %282 = arith.sitofp %281 : vector<8x128xi32> to vector<8x128xf32>
    %283 = arith.addf %273, %282 : vector<8x128xf32>
    %284 = vector.extract_strided_slice %172 {offsets = [0, 11], sizes = [8, 1], strides = [1, 1]} : vector<8x16xi32> to vector<8x1xi32>
    %c11_i32_19 = arith.constant 11 : i32
    %285 = vector.broadcast %c11_i32_19 : i32 to vector<8x1xi32>
    %286 = arith.cmpi sgt, %7, %285 : vector<8x1xi32>
    %287 = vector.broadcast %284 : vector<8x1xi32> to vector<8x128xi32>
    %288 = arith.cmpi eq, %287, %8 : vector<8x128xi32>
    %289 = vector.broadcast %286 : vector<8x1xi1> to vector<8x128xi1>
    %290 = arith.andi %288, %289 : vector<8x128xi1>
    %291 = arith.extui %290 : vector<8x128xi1> to vector<8x128xi32>
    %292 = arith.sitofp %291 : vector<8x128xi32> to vector<8x128xf32>
    %293 = arith.addf %283, %292 : vector<8x128xf32>
    %294 = vector.extract_strided_slice %172 {offsets = [0, 12], sizes = [8, 1], strides = [1, 1]} : vector<8x16xi32> to vector<8x1xi32>
    %c12_i32_20 = arith.constant 12 : i32
    %295 = vector.broadcast %c12_i32_20 : i32 to vector<8x1xi32>
    %296 = arith.cmpi sgt, %7, %295 : vector<8x1xi32>
    %297 = vector.broadcast %294 : vector<8x1xi32> to vector<8x128xi32>
    %298 = arith.cmpi eq, %297, %8 : vector<8x128xi32>
    %299 = vector.broadcast %296 : vector<8x1xi1> to vector<8x128xi1>
    %300 = arith.andi %298, %299 : vector<8x128xi1>
    %301 = arith.extui %300 : vector<8x128xi1> to vector<8x128xi32>
    %302 = arith.sitofp %301 : vector<8x128xi32> to vector<8x128xf32>
    %303 = arith.addf %293, %302 : vector<8x128xf32>
    %304 = vector.extract_strided_slice %172 {offsets = [0, 13], sizes = [8, 1], strides = [1, 1]} : vector<8x16xi32> to vector<8x1xi32>
    %c13_i32_21 = arith.constant 13 : i32
    %305 = vector.broadcast %c13_i32_21 : i32 to vector<8x1xi32>
    %306 = arith.cmpi sgt, %7, %305 : vector<8x1xi32>
    %307 = vector.broadcast %304 : vector<8x1xi32> to vector<8x128xi32>
    %308 = arith.cmpi eq, %307, %8 : vector<8x128xi32>
    %309 = vector.broadcast %306 : vector<8x1xi1> to vector<8x128xi1>
    %310 = arith.andi %308, %309 : vector<8x128xi1>
    %311 = arith.extui %310 : vector<8x128xi1> to vector<8x128xi32>
    %312 = arith.sitofp %311 : vector<8x128xi32> to vector<8x128xf32>
    %313 = arith.addf %303, %312 : vector<8x128xf32>
    %314 = vector.extract_strided_slice %172 {offsets = [0, 14], sizes = [8, 1], strides = [1, 1]} : vector<8x16xi32> to vector<8x1xi32>
    %c14_i32_22 = arith.constant 14 : i32
    %315 = vector.broadcast %c14_i32_22 : i32 to vector<8x1xi32>
    %316 = arith.cmpi sgt, %7, %315 : vector<8x1xi32>
    %317 = vector.broadcast %314 : vector<8x1xi32> to vector<8x128xi32>
    %318 = arith.cmpi eq, %317, %8 : vector<8x128xi32>
    %319 = vector.broadcast %316 : vector<8x1xi1> to vector<8x128xi1>
    %320 = arith.andi %318, %319 : vector<8x128xi1>
    %321 = arith.extui %320 : vector<8x128xi1> to vector<8x128xi32>
    %322 = arith.sitofp %321 : vector<8x128xi32> to vector<8x128xf32>
    %323 = arith.addf %313, %322 : vector<8x128xf32>
    %324 = vector.extract_strided_slice %172 {offsets = [0, 15], sizes = [8, 1], strides = [1, 1]} : vector<8x16xi32> to vector<8x1xi32>
    %c15_i32_23 = arith.constant 15 : i32
    %325 = vector.broadcast %c15_i32_23 : i32 to vector<8x1xi32>
    %326 = arith.cmpi sgt, %7, %325 : vector<8x1xi32>
    %327 = vector.broadcast %324 : vector<8x1xi32> to vector<8x128xi32>
    %328 = arith.cmpi eq, %327, %8 : vector<8x128xi32>
    %329 = vector.broadcast %326 : vector<8x1xi1> to vector<8x128xi1>
    %330 = arith.andi %328, %329 : vector<8x128xi1>
    %331 = arith.extui %330 : vector<8x128xi1> to vector<8x128xi32>
    %332 = arith.sitofp %331 : vector<8x128xi32> to vector<8x128xf32>
    %333 = arith.addf %323, %332 : vector<8x128xf32>
    %334 = arith.sitofp %6 : vector<8x1xi32> to vector<8x1xf32>
    %cst_24 = arith.constant 9.99999971E-10 : f32
    %335 = vector.broadcast %cst_24 : f32 to vector<8x1xf32>
    %336 = arith.maximumf %334, %335 : vector<8x1xf32>
    %cst_25 = arith.constant 1.000000e+00 : f32
    %337 = vector.broadcast %cst_25 : f32 to vector<8x1xf32>
    %338 = arith.divf %337, %336 : vector<8x1xf32>
    %339 = arith.sitofp %7 : vector<8x1xi32> to vector<8x1xf32>
    %cst_26 = arith.constant 9.99999971E-10 : f32
    %340 = vector.broadcast %cst_26 : f32 to vector<8x1xf32>
    %341 = arith.maximumf %339, %340 : vector<8x1xf32>
    %cst_27 = arith.constant 1.000000e+00 : f32
    %342 = vector.broadcast %cst_27 : f32 to vector<8x1xf32>
    %343 = arith.divf %342, %341 : vector<8x1xf32>
    %cst_28 = arith.constant dense<0.000000e+00> : vector<8x128xf32>
    %344 = tpu.matmul %171, %9, %cst_28 {dimension_numbers = #tpu.dot_dimension_numbers<[1], [0], [0], [1], [0, 0, 1, 1], [], []>} : vector<8x128xf32>, vector<128x128xf32>, vector<8x128xf32> -> vector<8x128xf32>
    %345 = vector.broadcast %338 : vector<8x1xf32> to vector<8x128xf32>
    %346 = arith.mulf %344, %345 : vector<8x128xf32>
    %cst_29 = arith.constant dense<0.000000e+00> : vector<8x128xf32>
    %347 = tpu.matmul %333, %9, %cst_29 {dimension_numbers = #tpu.dot_dimension_numbers<[1], [0], [0], [1], [0, 0, 1, 1], [], []>} : vector<8x128xf32>, vector<128x128xf32>, vector<8x128xf32> -> vector<8x128xf32>
    %348 = vector.broadcast %343 : vector<8x1xf32> to vector<8x128xf32>
    %349 = arith.mulf %347, %348 : vector<8x128xf32>
    %350 = tpu.iota {dimensions = array<i32: 1>} : vector<8x128xi32>
    %351 = tpu.iota {dimensions = array<i32: 1>} : vector<8x128xi32>
    %352 = vector.broadcast %1 : vector<8x1xi32> to vector<8x128xi32>
    %353 = arith.cmpi eq, %352, %350 : vector<8x128xi32>
    %354 = arith.extui %353 : vector<8x128xi1> to vector<8x128xi32>
    %355 = arith.sitofp %354 : vector<8x128xi32> to vector<8x128xf32>
    %356 = vector.broadcast %2 : vector<8x1xi32> to vector<8x128xi32>
    %357 = arith.cmpi eq, %356, %350 : vector<8x128xi32>
    %358 = arith.extui %357 : vector<8x128xi1> to vector<8x128xi32>
    %359 = arith.sitofp %358 : vector<8x128xi32> to vector<8x128xf32>
    %360 = vector.broadcast %3 : vector<8x1xi32> to vector<8x128xi32>
    %361 = arith.cmpi eq, %360, %351 : vector<8x128xi32>
    %362 = arith.extui %361 : vector<8x128xi1> to vector<8x128xi32>
    %363 = arith.sitofp %362 : vector<8x128xi32> to vector<8x128xf32>
    %364 = vector.broadcast %4 : vector<8x1xi32> to vector<8x128xi32>
    %365 = arith.cmpi eq, %364, %351 : vector<8x128xi32>
    %366 = arith.extui %365 : vector<8x128xi1> to vector<8x128xi32>
    %367 = arith.sitofp %366 : vector<8x128xi32> to vector<8x128xf32>
    %368 = arith.addf %363, %367 : vector<8x128xf32>
    %369 = vector.broadcast %5 : vector<8x1xi32> to vector<8x128xi32>
    %370 = arith.cmpi eq, %369, %351 : vector<8x128xi32>
    %371 = arith.extui %370 : vector<8x128xi1> to vector<8x128xi32>
    %372 = arith.sitofp %371 : vector<8x128xi32> to vector<8x128xf32>
    %373 = arith.addf %368, %372 : vector<8x128xf32>
    %c0_30 = arith.constant 0 : index
    %c0_31 = arith.constant 0 : index
    %374 = vector.load %arg5[%c0_30, %c0_31] : memref<128x128xf32, #tpu.memory_space<vmem>>, vector<128x128xf32>
    %cst_32 = arith.constant dense<0.000000e+00> : vector<8x128xf32>
    %375 = tpu.matmul %355, %374, %cst_32 {dimension_numbers = #tpu.dot_dimension_numbers<[1], [0], [0], [1], [0, 0, 1, 1], [], []>} : vector<8x128xf32>, vector<128x128xf32>, vector<8x128xf32> -> vector<8x128xf32>
    %cst_33 = arith.constant dense<0.000000e+00> : vector<8x128xf32>
    %376 = tpu.matmul %359, %374, %cst_33 {dimension_numbers = #tpu.dot_dimension_numbers<[1], [0], [0], [1], [0, 0, 1, 1], [], []>} : vector<8x128xf32>, vector<128x128xf32>, vector<8x128xf32> -> vector<8x128xf32>
    %c0_34 = arith.constant 0 : index
    %c0_35 = arith.constant 0 : index
    %377 = vector.load %arg6[%c0_34, %c0_35] : memref<128x128xf32, #tpu.memory_space<vmem>>, vector<128x128xf32>
    %cst_36 = arith.constant dense<0.000000e+00> : vector<8x128xf32>
    %378 = tpu.matmul %373, %377, %cst_36 {dimension_numbers = #tpu.dot_dimension_numbers<[1], [0], [0], [1], [0, 0, 1, 1], [], []>} : vector<8x128xf32>, vector<128x128xf32>, vector<8x128xf32> -> vector<8x128xf32>
    %379 = arith.addf %375, %346 : vector<8x128xf32>
    %cst_37 = arith.constant 0.333333343 : f32
    %380 = vector.broadcast %cst_37 : f32 to vector<8x128xf32>
    %381 = arith.mulf %379, %380 : vector<8x128xf32>
    %c0_38 = arith.constant 0 : index
    %c0_39 = arith.constant 0 : index
    %c0_40 = arith.constant 0 : index
    %382 = vector.load %arg7[%c0_38, %c0_39, %c0_40] : memref<3x8x128xf32, #tpu.memory_space<vmem>>, vector<1x8x128xf32>
    %383 = vector.shape_cast %382 : vector<1x8x128xf32> to vector<8x128xf32>
    %384 = vector.shape_cast %381 : vector<8x128xf32> to vector<1x8x128xf32>
    tpu.vector_store %arg7[%c0_38, %c0_39, %c0_40], %384 {strides = array<i32>} : memref<3x8x128xf32, #tpu.memory_space<vmem>>, vector<1x8x128xf32>,
    %cst_41 = arith.constant 0.333333343 : f32
    %385 = vector.broadcast %cst_41 : f32 to vector<8x128xf32>
    %386 = arith.mulf %378, %385 : vector<8x128xf32>
    %c1 = arith.constant 1 : index
    %c0_42 = arith.constant 0 : index
    %c0_43 = arith.constant 0 : index
    %387 = vector.load %arg7[%c1, %c0_42, %c0_43] : memref<3x8x128xf32, #tpu.memory_space<vmem>>, vector<1x8x128xf32>
    %388 = vector.shape_cast %387 : vector<1x8x128xf32> to vector<8x128xf32>
    %389 = vector.shape_cast %386 : vector<8x128xf32> to vector<1x8x128xf32>
    tpu.vector_store %arg7[%c1, %c0_42, %c0_43], %389 {strides = array<i32>} : memref<3x8x128xf32, #tpu.memory_space<vmem>>, vector<1x8x128xf32>,
    %390 = arith.addf %376, %349 : vector<8x128xf32>
    %cst_44 = arith.constant 0.333333343 : f32
    %391 = vector.broadcast %cst_44 : f32 to vector<8x128xf32>
    %392 = arith.mulf %390, %391 : vector<8x128xf32>
    %c2 = arith.constant 2 : index
    %c0_45 = arith.constant 0 : index
    %c0_46 = arith.constant 0 : index
    %393 = vector.load %arg7[%c2, %c0_45, %c0_46] : memref<3x8x128xf32, #tpu.memory_space<vmem>>, vector<1x8x128xf32>
    %394 = vector.shape_cast %393 : vector<1x8x128xf32> to vector<8x128xf32>
    %395 = vector.shape_cast %392 : vector<8x128xf32> to vector<1x8x128xf32>
    tpu.vector_store %arg7[%c2, %c0_45, %c0_46], %395 {strides = array<i32>} : memref<3x8x128xf32, #tpu.memory_space<vmem>>, vector<1x8x128xf32>,
    return
  }
  func.func @transform_0(%arg0: i32) -> (i32, i32) {
    %c0_i32 = arith.constant 0 : i32
    %c0_i32_0 = arith.constant 0 : i32
    return %arg0, %c0_i32 : i32, i32
  }
  func.func @transform_1(%arg0: i32) -> (i32, i32) {
    %c0_i32 = arith.constant 0 : i32
    %c0_i32_0 = arith.constant 0 : i32
    return %arg0, %c0_i32 : i32, i32
  }
  func.func @transform_2(%arg0: i32) -> (i32, i32) {
    %c0_i32 = arith.constant 0 : i32
    %c0_i32_0 = arith.constant 0 : i32
    return %arg0, %c0_i32 : i32, i32
  }
  func.func @transform_3(%arg0: i32) -> (i32, i32) {
    %c0_i32 = arith.constant 0 : i32
    %c0_i32_0 = arith.constant 0 : i32
    %c0_i32_1 = arith.constant 0 : i32
    return %c0_i32, %c0_i32_0 : i32, i32
  }
  func.func @transform_4(%arg0: i32) -> (i32, i32) {
    %c0_i32 = arith.constant 0 : i32
    %c0_i32_0 = arith.constant 0 : i32
    %c0_i32_1 = arith.constant 0 : i32
    return %c0_i32, %c0_i32_0 : i32, i32
  }
  func.func @transform_5(%arg0: i32) -> (i32, i32) {
    %c0_i32 = arith.constant 0 : i32
    %c0_i32_0 = arith.constant 0 : i32
    %c0_i32_1 = arith.constant 0 : i32
    return %c0_i32, %c0_i32_0 : i32, i32
  }
  func.func @transform_6(%arg0: i32) -> (i32, i32, i32) {
    %c0_i32 = arith.constant 0 : i32
    %c0_i32_0 = arith.constant 0 : i32
    %c0_i32_1 = arith.constant 0 : i32
    return %c0_i32, %arg0, %c0_i32_0 : i32, i32, i32
  }
}

</mosaic_0001>

<llo_original>
// kernel: tpu_custom_call.1
$region0: #{tpu_custom_call.1}
  #allocation0 [shape = 'u32[]', space=smem, size = 0x4, offset = 0x4, fixed_abs, tag = 'smem constant byte address 0x4 - core index']
  #allocation1 [shape = 'u32[144,128]{1,0:T(1,128)}', space=vmem, size = 0x12000, scoped, tag = 'internal scratch']
  %s0 = inlined_call_operand.hbm [shape: s32[8,16], index: 0, kind: input, shape index: {}]
  %s1 = inlined_call_operand.hbm [shape: s32[8,16], index: 1, kind: input, shape index: {}]
  %s2 = inlined_call_operand.hbm [shape: s32[8,8], index: 2, kind: input, shape index: {}]
  %s3 = inlined_call_operand.hbm [shape: f32[128,128], index: 3, kind: input, shape index: {}]
  %s4 = inlined_call_operand.hbm [shape: f32[128,128], index: 4, kind: input, shape index: {}]
  %s5 = inlined_call_operand.hbm [shape: f32[128,128], index: 5, kind: input, shape index: {}]
  %s6 = inlined_call_operand.hbm [shape: f32[3,8,128], index: 6, kind: output, shape index: {}]
  %s7 = sld [smem:[#allocation0]]
  $region58: #{tpu_custom_call.1} parent=0
    _
  %s9 = ssub.s32 1, %s7
  %s10 = scalar_select 0, %s9, %s7
  $region1: #{tpu_custom_call.1} parent=0
    #allocation2 [shape = 'u8[4096]{0}', space=vmem, size = 0x1000, scoped, tag = 'input window, operand 0, single buffered']
    #allocation3 [shape = 's32[1]{0}', space=sflag, size = 0x4, scoped, tag = 'scoped memory for tpu_custom_call.1']
    #allocation4 [shape = 's32[1]{0}', space=sflag, size = 0x4, scoped, tag = 'scoped memory for tpu_custom_call.1']
    #allocation5 [shape = 'u8[4096]{0}', space=vmem, size = 0x1000, scoped, tag = 'input window, operand 1, single buffered']
    #allocation6 [shape = 's32[1]{0}', space=sflag, size = 0x4, scoped, tag = 'scoped memory for tpu_custom_call.1']
    #allocation7 [shape = 'u8[4096]{0}', space=vmem, size = 0x1000, scoped, tag = 'input window, operand 2, single buffered']
    #allocation8 [shape = 'u8[65536]{0}', space=vmem, size = 0x10000, scoped, tag = 'input window, operand 3, single buffered']
    #allocation9 [shape = 's32[1]{0}', space=sflag, size = 0x4, scoped, tag = 'scoped memory for tpu_custom_call.1']
    #allocation10 [shape = 'u8[65536]{0}', space=vmem, size = 0x10000, scoped, tag = 'input window, operand 4, single buffered']
    #allocation11 [shape = 'u8[65536]{0}', space=vmem, size = 0x10000, scoped, tag = 'input window, operand 5, single buffered']
    #allocation12 [shape = 's32[1]{0}', space=sflag, size = 0x4, scoped, tag = 'scoped memory for tpu_custom_call.1']
    #allocation13 [shape = 'u8[12288]{0}', space=vmem, size = 0x3000, scoped, tag = 'output window, operand 0, single buffered']
    %11 = vsyncpa [#allocation3], 0
    %12 = vsyncpa [#allocation6], 0
    %13 = vsyncpa [#allocation9], 0
    %14 = vsyncpa [#allocation12], 0
    %15 = vsyncpa [#allocation4], 0
    // Predicated region
    $region2: #{tpu_custom_call.1} parent=1 // pred_check
      _
    $region3: #{tpu_custom_call.1} parent=1 // pred_check_branch
      %17 = sbr.rel (0) target = $region5
    $region4: #{tpu_custom_call.1} parent=1 // pred_region
      %s19 = ssub.s32 128, 128
      %20 = vsyncadd [#allocation3], %s19
      %s22 = sshll.u32 [#allocation2], 4
      %s23 = int_to_ptr.vmem [resolvable:$true] %s22
      %25 = dma.hbm_to_vmem [thread:$0]  %s0, 128, %s23, [#allocation3]
    $region5: #{tpu_custom_call.1} parent=1 // pred_fallthru
      _
    // Predicated region
    $region6: #{tpu_custom_call.1} parent=1 // pred_check
      _
    $region7: #{tpu_custom_call.1} parent=1 // pred_check_branch
      %27 = sbr.rel (0) target = $region9
    $region8: #{tpu_custom_call.1} parent=1 // pred_region
      %s29 = ssub.s32 128, 128
      %30 = vsyncadd [#allocation6], %s29
      %s32 = sshll.u32 [#allocation5], 4
      %s33 = int_to_ptr.vmem [resolvable:$true] %s32
      %35 = dma.hbm_to_vmem [thread:$0]  %s1, 128, %s33, [#allocation6]
    $region9: #{tpu_custom_call.1} parent=1 // pred_fallthru
      _
    // Predicated region
    $region10: #{tpu_custom_call.1} parent=1 // pred_check
      _
    $region11: #{tpu_custom_call.1} parent=1 // pred_check_branch
      %37 = sbr.rel (0) target = $region13
    $region12: #{tpu_custom_call.1} parent=1 // pred_region
      %s39 = ssub.s32 128, 128
      %40 = vsyncadd [#allocation6], %s39
      %s42 = sshll.u32 [#allocation7], 4
      %s43 = int_to_ptr.vmem [resolvable:$true] %s42
      %45 = dma.hbm_to_vmem [thread:$0]  %s2, 128, %s43, [#allocation6]
    $region13: #{tpu_custom_call.1} parent=1 // pred_fallthru
      _
    // Predicated region
    $region14: #{tpu_custom_call.1} parent=1 // pred_check
      _
    $region15: #{tpu_custom_call.1} parent=1 // pred_check_branch
      %47 = sbr.rel (0) target = $region17
    $region16: #{tpu_custom_call.1} parent=1 // pred_region
      %s49 = ssub.s32 2048, 2048
      %50 = vsyncadd [#allocation9], %s49
      %s51 = sshll.u32 [#allocation8], 4
      %s52 = int_to_ptr.vmem [resolvable:$true] %s51
      %57 = dma.hbm_to_vmem [thread:$0]  %s3, 2048, %s52, [#allocation9], 128, 128, 8
    $region17: #{tpu_custom_call.1} parent=1 // pred_fallthru
      _
    // Predicated region
    $region18: #{tpu_custom_call.1} parent=1 // pred_check
      _
    $region19: #{tpu_custom_call.1} parent=1 // pred_check_branch
      %59 = sbr.rel (0) target = $region21
    $region20: #{tpu_custom_call.1} parent=1 // pred_region
      %s61 = ssub.s32 2048, 2048
      %62 = vsyncadd [#allocation9], %s61
      %s63 = sshll.u32 [#allocation10], 4
      %s64 = int_to_ptr.vmem [resolvable:$true] %s63
      %69 = dma.hbm_to_vmem [thread:$0]  %s4, 2048, %s64, [#allocation9], 128, 128, 8
    $region21: #{tpu_custom_call.1} parent=1 // pred_fallthru
      _
    // Predicated region
    $region22: #{tpu_custom_call.1} parent=1 // pred_check
      _
    $region23: #{tpu_custom_call.1} parent=1 // pred_check_branch
      %71 = sbr.rel (0) target = $region25
    $region24: #{tpu_custom_call.1} parent=1 // pred_region
      %s73 = ssub.s32 2048, 2048
      %74 = vsyncadd [#allocation12], %s73
      %s75 = sshll.u32 [#allocation11], 4
      %s76 = int_to_ptr.vmem [resolvable:$true] %s75
      %81 = dma.hbm_to_vmem [thread:$0]  %s5, 2048, %s76, [#allocation12], 128, 128, 8
    $region25: #{tpu_custom_call.1} parent=1 // pred_fallthru
      _
    // Predicated region
    $region26: #{tpu_custom_call.1} parent=1 // pred_check
      _
    $region27: #{tpu_custom_call.1} parent=1 // pred_check_branch
      %83 = sbr.rel (0) target = $region29
    $region28: #{tpu_custom_call.1} parent=1 // pred_region
      %84 = dma.done [#allocation3], 128
    $region29: #{tpu_custom_call.1} parent=1 // pred_fallthru
      _
    // Predicated region
    $region30: #{tpu_custom_call.1} parent=1 // pred_check
      _
    $region31: #{tpu_custom_call.1} parent=1 // pred_check_branch
      %86 = sbr.rel (0) target = $region33
    $region32: #{tpu_custom_call.1} parent=1 // pred_region
      %87 = dma.done [#allocation6], 128
    $region33: #{tpu_custom_call.1} parent=1 // pred_fallthru
      _
    // Predicated region
    $region34: #{tpu_custom_call.1} parent=1 // pred_check
      _
    $region35: #{tpu_custom_call.1} parent=1 // pred_check_branch
      %89 = sbr.rel (0) target = $region37
    $region36: #{tpu_custom_call.1} parent=1 // pred_region
      %90 = dma.done [#allocation6], 128
    $region37: #{tpu_custom_call.1} parent=1 // pred_fallthru
      _
    // Predicated region
    $region38: #{tpu_custom_call.1} parent=1 // pred_check
      _
    $region39: #{tpu_custom_call.1} parent=1 // pred_check_branch
      %92 = sbr.rel (0) target = $region41
    $region40: #{tpu_custom_call.1} parent=1 // pred_region
      %93 = dma.done [#allocation9], 2048
    $region41: #{tpu_custom_call.1} parent=1 // pred_fallthru
      _
    // Predicated region
    $region42: #{tpu_custom_call.1} parent=1 // pred_check
      _
    $region43: #{tpu_custom_call.1} parent=1 // pred_check_branch
      %95 = sbr.rel (0) target = $region45
    $region44: #{tpu_custom_call.1} parent=1 // pred_region
      %96 = dma.done [#allocation9], 2048
    $region45: #{tpu_custom_call.1} parent=1 // pred_fallthru
      _
    // Predicated region
    $region46: #{tpu_custom_call.1} parent=1 // pred_check
      _
    $region47: #{tpu_custom_call.1} parent=1 // pred_check_branch
      %98 = sbr.rel (0) target = $region49
    $region48: #{tpu_custom_call.1} parent=1 // pred_region
      %99 = dma.done [#allocation12], 2048
    $region49: #{tpu_custom_call.1} parent=1 // pred_fallthru
      _
    %v100 = vld [vmem:[#allocation7] sm:$0xff]
    %v101 = vlaneseq
    %v102 = vand.u32 %v101, 127
    %v103 = vld [vmem:[#allocation8] sm:$0xff]
    %v104 = vld [vmem:[#allocation8 + $0x8] sm:$0xff]
    %v105 = vld [vmem:[#allocation8 + $0x10] sm:$0xff]
    %v106 = vld [vmem:[#allocation8 + $0x18] sm:$0xff]
    %v107 = vld [vmem:[#allocation8 + $0x20] sm:$0xff]
    %v108 = vld [vmem:[#allocation8 + $0x28] sm:$0xff]
    %v109 = vld [vmem:[#allocation8 + $0x30] sm:$0xff]
    %v110 = vld [vmem:[#allocation8 + $0x38] sm:$0xff]
    %v111 = vld [vmem:[#allocation8 + $0x40] sm:$0xff]
    %v112 = vld [vmem:[#allocation8 + $0x48] sm:$0xff]
    %v113 = vld [vmem:[#allocation8 + $0x50] sm:$0xff]
    %v114 = vld [vmem:[#allocation8 + $0x58] sm:$0xff]
    %v115 = vld [vmem:[#allocation8 + $0x60] sm:$0xff]
    %v116 = vld [vmem:[#allocation8 + $0x68] sm:$0xff]
    %v117 = vld [vmem:[#allocation8 + $0x70] sm:$0xff]
    %v118 = vld [vmem:[#allocation8 + $0x78] sm:$0xff]
    %v119 = vld [vmem:[#allocation2] sm:$0xff]
    %vm120 = vcmp.gt.s32.totalorder %v100, 0
    %121 = vset.pattern.permute.xlu0 0
    %122 = vperm.xlu0 %121, %v119
    %v123 = vpop.permute.xlu0 %122
    %vm124 = vcmp.eq.s32.totalorder %v123, %v102
    %v125 = vsel %vm120, 1, 0
    %126 = vset.pattern.permute.xlu0 5
    %127 = vperm.xlu0 %126, %v125
    %v128 = vpop.permute.xlu0 %127
    %vm129 = vcmp.eq.s32.totalorder %v128, 1
    %vm130 = vmand %vm124, %vm129
    %v131 = vsel %vm130, 1, 0
    %v132 = vcvt.s32.f32 %v131
    %v133 = vadd.f32 %v132, 0.0
    %vm134 = vcmp.gt.s32.totalorder %v100, 1
    %135 = vset.pattern.permute.xlu0 1
    %136 = vperm.xlu0 %135, %v119
    %v137 = vpop.permute.xlu0 %136
    %vm138 = vcmp.eq.s32.totalorder %v137, %v102
    %v139 = vsel %vm134, 1, 0
    %140 = vset.pattern.permute.xlu0 5
    %141 = vperm.xlu0 %140, %v139
    %v142 = vpop.permute.xlu0 %141
    %vm143 = vcmp.eq.s32.totalorder %v142, 1
    %vm144 = vmand %vm138, %vm143
    %v145 = vsel %vm144, 1, 0
    %v146 = vcvt.s32.f32 %v145
    %v147 = vadd.f32 %v133, %v146
    %vm148 = vcmp.gt.s32.totalorder %v100, 2
    %149 = vset.pattern.permute.xlu0 2
    %150 = vperm.xlu0 %149, %v119
    %v151 = vpop.permute.xlu0 %150
    %vm152 = vcmp.eq.s32.totalorder %v151, %v102
    %v153 = vsel %vm148, 1, 0
    %154 = vset.pattern.permute.xlu0 5
    %155 = vperm.xlu0 %154, %v153
    %v156 = vpop.permute.xlu0 %155
    %vm157 = vcmp.eq.s32.totalorder %v156, 1
    %vm158 = vmand %vm152, %vm157
    %v159 = vsel %vm158, 1, 0
    %v160 = vcvt.s32.f32 %v159
    %v161 = vadd.f32 %v147, %v160
    %vm162 = vcmp.gt.s32.totalorder %v100, 3
    %163 = vset.pattern.permute.xlu0 3
    %164 = vperm.xlu0 %163, %v119
    %v165 = vpop.permute.xlu0 %164
    %vm166 = vcmp.eq.s32.totalorder %v165, %v102
    %v167 = vsel %vm162, 1, 0
    %168 = vset.pattern.permute.xlu0 5
    %169 = vperm.xlu0 %168, %v167
    %v170 = vpop.permute.xlu0 %169
    %vm171 = vcmp.eq.s32.totalorder %v170, 1
    %vm172 = vmand %vm166, %vm171
    %v173 = vsel %vm172, 1, 0
    %v174 = vcvt.s32.f32 %v173
    %v175 = vadd.f32 %v161, %v174
    %vm176 = vcmp.gt.s32.totalorder %v100, 4
    %177 = vset.pattern.permute.xlu0 4
    %178 = vperm.xlu0 %177, %v119
    %v179 = vpop.permute.xlu0 %178
    %vm180 = vcmp.eq.s32.totalorder %v179, %v102
    %v181 = vsel %vm176, 1, 0
    %182 = vset.pattern.permute.xlu0 5
    %183 = vperm.xlu0 %182, %v181
    %v184 = vpop.permute.xlu0 %183
    %vm185 = vcmp.eq.s32.totalorder %v184, 1
    %vm186 = vmand %vm180, %vm185
    %v187 = vsel %vm186, 1, 0
    %v188 = vcvt.s32.f32 %v187
    %v189 = vadd.f32 %v175, %v188
    %vm190 = vcmp.gt.s32.totalorder %v100, 5
    %191 = vset.pattern.permute.xlu0 5
    %192 = vperm.xlu0 %191, %v119
    %v193 = vpop.permute.xlu0 %192
    %vm194 = vcmp.eq.s32.totalorder %v193, %v102
    %v195 = vsel %vm190, 1, 0
    %196 = vset.pattern.permute.xlu0 5
    %197 = vperm.xlu0 %196, %v195
    %v198 = vpop.permute.xlu0 %197
    %vm199 = vcmp.eq.s32.totalorder %v198, 1
    %vm200 = vmand %vm194, %vm199
    %v201 = vsel %vm200, 1, 0
    %v202 = vcvt.s32.f32 %v201
    %v203 = vadd.f32 %v189, %v202
    %vm204 = vcmp.gt.s32.totalorder %v100, 6
    %205 = vset.pattern.permute.xlu0 6
    %206 = vperm.xlu0 %205, %v119
    %v207 = vpop.permute.xlu0 %206
    %vm208 = vcmp.eq.s32.totalorder %v207, %v102
    %v209 = vsel %vm204, 1, 0
    %210 = vset.pattern.permute.xlu0 5
    %211 = vperm.xlu0 %210, %v209
    %v212 = vpop.permute.xlu0 %211
    %vm213 = vcmp.eq.s32.totalorder %v212, 1
    %vm214 = vmand %vm208, %vm213
    %v215 = vsel %vm214, 1, 0
    %v216 = vcvt.s32.f32 %v215
    %v217 = vadd.f32 %v203, %v216
    %vm218 = vcmp.gt.s32.totalorder %v100, 7
    %219 = vset.pattern.permute.xlu0 7
    %220 = vperm.xlu0 %219, %v119
    %v221 = vpop.permute.xlu0 %220
    %vm222 = vcmp.eq.s32.totalorder %v221, %v102
    %v223 = vsel %vm218, 1, 0
    %224 = vset.pattern.permute.xlu0 5
    %225 = vperm.xlu0 %224, %v223
    %v226 = vpop.permute.xlu0 %225
    %vm227 = vcmp.eq.s32.totalorder %v226, 1
    %vm228 = vmand %vm222, %vm227
    %v229 = vsel %vm228, 1, 0
    %v230 = vcvt.s32.f32 %v229
    %v231 = vadd.f32 %v217, %v230
    %vm232 = vcmp.gt.s32.totalorder %v100, 8
    %233 = vset.pattern.permute.xlu0 8
    %234 = vperm.xlu0 %233, %v119
    %v235 = vpop.permute.xlu0 %234
    %vm236 = vcmp.eq.s32.totalorder %v235, %v102
    %v237 = vsel %vm232, 1, 0
    %238 = vset.pattern.permute.xlu0 5
    %239 = vperm.xlu0 %238, %v237
    %v240 = vpop.permute.xlu0 %239
    %vm241 = vcmp.eq.s32.totalorder %v240, 1
    %vm242 = vmand %vm236, %vm241
    %v243 = vsel %vm242, 1, 0
    %v244 = vcvt.s32.f32 %v243
    %v245 = vadd.f32 %v231, %v244
    %vm246 = vcmp.gt.s32.totalorder %v100, 9
    %247 = vset.pattern.permute.xlu0 9
    %248 = vperm.xlu0 %247, %v119
    %v249 = vpop.permute.xlu0 %248
    %vm250 = vcmp.eq.s32.totalorder %v249, %v102
    %v251 = vsel %vm246, 1, 0
    %252 = vset.pattern.permute.xlu0 5
    %253 = vperm.xlu0 %252, %v251
    %v254 = vpop.permute.xlu0 %253
    %vm255 = vcmp.eq.s32.totalorder %v254, 1
    %vm256 = vmand %vm250, %vm255
    %v257 = vsel %vm256, 1, 0
    %v258 = vcvt.s32.f32 %v257
    %v259 = vadd.f32 %v245, %v258
    %vm260 = vcmp.gt.s32.totalorder %v100, 10
    %261 = vset.pattern.permute.xlu0 10
    %262 = vperm.xlu0 %261, %v119
    %v263 = vpop.permute.xlu0 %262
    %vm264 = vcmp.eq.s32.totalorder %v263, %v102
    %v265 = vsel %vm260, 1, 0
    %266 = vset.pattern.permute.xlu0 5
    %267 = vperm.xlu0 %266, %v265
    %v268 = vpop.permute.xlu0 %267
    %vm269 = vcmp.eq.s32.totalorder %v268, 1
    %vm270 = vmand %vm264, %vm269
    %v271 = vsel %vm270, 1, 0
    %v272 = vcvt.s32.f32 %v271
    %v273 = vadd.f32 %v259, %v272
    %vm274 = vcmp.gt.s32.totalorder %v100, 11
    %275 = vset.pattern.permute.xlu0 11
    %276 = vperm.xlu0 %275, %v119
    %v277 = vpop.permute.xlu0 %276
    %vm278 = vcmp.eq.s32.totalorder %v277, %v102
    %v279 = vsel %vm274, 1, 0
    %280 = vset.pattern.permute.xlu0 5
    %281 = vperm.xlu0 %280, %v279
    %v282 = vpop.permute.xlu0 %281
    %vm283 = vcmp.eq.s32.totalorder %v282, 1
    %vm284 = vmand %vm278, %vm283
    %v285 = vsel %vm284, 1, 0
    %v286 = vcvt.s32.f32 %v285
    %v287 = vadd.f32 %v273, %v286
    %vm288 = vcmp.gt.s32.totalorder %v100, 12
    %289 = vset.pattern.permute.xlu0 12
    %290 = vperm.xlu0 %289, %v119
    %v291 = vpop.permute.xlu0 %290
    %vm292 = vcmp.eq.s32.totalorder %v291, %v102
    %v293 = vsel %vm288, 1, 0
    %294 = vset.pattern.permute.xlu0 5
    %295 = vperm.xlu0 %294, %v293
    %v296 = vpop.permute.xlu0 %295
    %vm297 = vcmp.eq.s32.totalorder %v296, 1
    %vm298 = vmand %vm292, %vm297
    %v299 = vsel %vm298, 1, 0
    %v300 = vcvt.s32.f32 %v299
    %v301 = vadd.f32 %v287, %v300
    %vm302 = vcmp.gt.s32.totalorder %v100, 13
    %303 = vset.pattern.permute.xlu0 13
    %304 = vperm.xlu0 %303, %v119
    %v305 = vpop.permute.xlu0 %304
    %vm306 = vcmp.eq.s32.totalorder %v305, %v102
    %v307 = vsel %vm302, 1, 0
    %308 = vset.pattern.permute.xlu0 5
    %309 = vperm.xlu0 %308, %v307
    %v310 = vpop.permute.xlu0 %309
    %vm311 = vcmp.eq.s32.totalorder %v310, 1
    %vm312 = vmand %vm306, %vm311
    %v313 = vsel %vm312, 1, 0
    %v314 = vcvt.s32.f32 %v313
    %v315 = vadd.f32 %v301, %v314
    %vm316 = vcmp.gt.s32.totalorder %v100, 14
    %317 = vset.pattern.permute.xlu0 14
    %318 = vperm.xlu0 %317, %v119
    %v319 = vpop.permute.xlu0 %318
    %vm320 = vcmp.eq.s32.totalorder %v319, %v102
    %v321 = vsel %vm316, 1, 0
    %322 = vset.pattern.permute.xlu0 5
    %323 = vperm.xlu0 %322, %v321
    %v324 = vpop.permute.xlu0 %323
    %vm325 = vcmp.eq.s32.totalorder %v324, 1
    %vm326 = vmand %vm320, %vm325
    %v327 = vsel %vm326, 1, 0
    %v328 = vcvt.s32.f32 %v327
    %v329 = vadd.f32 %v315, %v328
    %vm330 = vcmp.gt.s32.totalorder %v100, 15
    %331 = vset.pattern.permute.xlu0 15
    %332 = vperm.xlu0 %331, %v119
    %v333 = vpop.permute.xlu0 %332
    %vm334 = vcmp.eq.s32.totalorder %v333, %v102
    %v335 = vsel %vm330, 1, 0
    %336 = vset.pattern.permute.xlu0 5
    %337 = vperm.xlu0 %336, %v335
    %v338 = vpop.permute.xlu0 %337
    %vm339 = vcmp.eq.s32.totalorder %v338, 1
    %vm340 = vmand %vm334, %vm339
    %v341 = vsel %vm340, 1, 0
    %v342 = vcvt.s32.f32 %v341
    %v343 = vadd.f32 %v329, %v342
    %v344 = vld [vmem:[#allocation5] sm:$0xff]
    %345 = vset.pattern.permute.xlu0 0
    %346 = vperm.xlu0 %345, %v344
    %v347 = vpop.permute.xlu0 %346
    %vm348 = vcmp.eq.s32.totalorder %v347, %v102
    %349 = vset.pattern.permute.xlu0 6
    %350 = vperm.xlu0 %349, %v125
    %v351 = vpop.permute.xlu0 %350
    %vm352 = vcmp.eq.s32.totalorder %v351, 1
    %vm353 = vmand %vm348, %vm352
    %v354 = vsel %vm353, 1, 0
    %v355 = vcvt.s32.f32 %v354
    %v356 = vadd.f32 %v355, 0.0
    %357 = vset.pattern.permute.xlu0 1
    %358 = vperm.xlu0 %357, %v344
    %v359 = vpop.permute.xlu0 %358
    %vm360 = vcmp.eq.s32.totalorder %v359, %v102
    %361 = vset.pattern.permute.xlu0 6
    %362 = vperm.xlu0 %361, %v139
    %v363 = vpop.permute.xlu0 %362
    %vm364 = vcmp.eq.s32.totalorder %v363, 1
    %vm365 = vmand %vm360, %vm364
    %v366 = vsel %vm365, 1, 0
    %v367 = vcvt.s32.f32 %v366
    %v368 = vadd.f32 %v356, %v367
    %369 = vset.pattern.permute.xlu0 2
    %370 = vperm.xlu0 %369, %v344
    %v371 = vpop.permute.xlu0 %370
    %vm372 = vcmp.eq.s32.totalorder %v371, %v102
    %373 = vset.pattern.permute.xlu0 6
    %374 = vperm.xlu0 %373, %v153
    %v375 = vpop.permute.xlu0 %374
    %vm376 = vcmp.eq.s32.totalorder %v375, 1
    %vm377 = vmand %vm372, %vm376
    %v378 = vsel %vm377, 1, 0
    %v379 = vcvt.s32.f32 %v378
    %v380 = vadd.f32 %v368, %v379
    %381 = vset.pattern.permute.xlu0 3
    %382 = vperm.xlu0 %381, %v344
    %v383 = vpop.permute.xlu0 %382
    %vm384 = vcmp.eq.s32.totalorder %v383, %v102
    %385 = vset.pattern.permute.xlu0 6
    %386 = vperm.xlu0 %385, %v167
    %v387 = vpop.permute.xlu0 %386
    %vm388 = vcmp.eq.s32.totalorder %v387, 1
    %vm389 = vmand %vm384, %vm388
    %v390 = vsel %vm389, 1, 0
    %v391 = vcvt.s32.f32 %v390
    %v392 = vadd.f32 %v380, %v391
    %393 = vset.pattern.permute.xlu0 4
    %394 = vperm.xlu0 %393, %v344
    %v395 = vpop.permute.xlu0 %394
    %vm396 = vcmp.eq.s32.totalorder %v395, %v102
    %397 = vset.pattern.permute.xlu0 6
    %398 = vperm.xlu0 %397, %v181
    %v399 = vpop.permute.xlu0 %398
    %vm400 = vcmp.eq.s32.totalorder %v399, 1
    %vm401 = vmand %vm396, %vm400
    %v402 = vsel %vm401, 1, 0
    %v403 = vcvt.s32.f32 %v402
    %v404 = vadd.f32 %v392, %v403
    %405 = vset.pattern.permute.xlu0 5
    %406 = vperm.xlu0 %405, %v344
    %v407 = vpop.permute.xlu0 %406
    %vm408 = vcmp.eq.s32.totalorder %v407, %v102
    %409 = vset.pattern.permute.xlu0 6
    %410 = vperm.xlu0 %409, %v195
    %v411 = vpop.permute.xlu0 %410
    %vm412 = vcmp.eq.s32.totalorder %v411, 1
    %vm413 = vmand %vm408, %vm412
    %v414 = vsel %vm413, 1, 0
    %v415 = vcvt.s32.f32 %v414
    %v416 = vadd.f32 %v404, %v415
    %417 = vset.pattern.permute.xlu0 6
    %418 = vperm.xlu0 %417, %v344
    %v419 = vpop.permute.xlu0 %418
    %vm420 = vcmp.eq.s32.totalorder %v419, %v102
    %421 = vset.pattern.permute.xlu0 6
    %422 = vperm.xlu0 %421, %v209
    %v423 = vpop.permute.xlu0 %422
    %vm424 = vcmp.eq.s32.totalorder %v423, 1
    %vm425 = vmand %vm420, %vm424
    %v426 = vsel %vm425, 1, 0
    %v427 = vcvt.s32.f32 %v426
    %v428 = vadd.f32 %v416, %v427
    %429 = vset.pattern.permute.xlu0 7
    %430 = vperm.xlu0 %429, %v344
    %v431 = vpop.permute.xlu0 %430
    %vm432 = vcmp.eq.s32.totalorder %v431, %v102
    %433 = vset.pattern.permute.xlu0 6
    %434 = vperm.xlu0 %433, %v223
    %v435 = vpop.permute.xlu0 %434
    %vm436 = vcmp.eq.s32.totalorder %v435, 1
    %vm437 = vmand %vm432, %vm436
    %v438 = vsel %vm437, 1, 0
    %v439 = vcvt.s32.f32 %v438
    %v440 = vadd.f32 %v428, %v439
    %441 = vset.pattern.permute.xlu0 8
    %442 = vperm.xlu0 %441, %v344
    %v443 = vpop.permute.xlu0 %442
    %vm444 = vcmp.eq.s32.totalorder %v443, %v102
    %445 = vset.pattern.permute.xlu0 6
    %446 = vperm.xlu0 %445, %v237
    %v447 = vpop.permute.xlu0 %446
    %vm448 = vcmp.eq.s32.totalorder %v447, 1
    %vm449 = vmand %vm444, %vm448
    %v450 = vsel %vm449, 1, 0
    %v451 = vcvt.s32.f32 %v450
    %v452 = vadd.f32 %v440, %v451
    %453 = vset.pattern.permute.xlu0 9
    %454 = vperm.xlu0 %453, %v344
    %v455 = vpop.permute.xlu0 %454
    %vm456 = vcmp.eq.s32.totalorder %v455, %v102
    %457 = vset.pattern.permute.xlu0 6
    %458 = vperm.xlu0 %457, %v251
    %v459 = vpop.permute.xlu0 %458
    %vm460 = vcmp.eq.s32.totalorder %v459, 1
    %vm461 = vmand %vm456, %vm460
    %v462 = vsel %vm461, 1, 0
    %v463 = vcvt.s32.f32 %v462
    %v464 = vadd.f32 %v452, %v463
    %465 = vset.pattern.permute.xlu0 10
    %466 = vperm.xlu0 %465, %v344
    %v467 = vpop.permute.xlu0 %466
    %vm468 = vcmp.eq.s32.totalorder %v467, %v102
    %469 = vset.pattern.permute.xlu0 6
    %470 = vperm.xlu0 %469, %v265
    %v471 = vpop.permute.xlu0 %470
    %vm472 = vcmp.eq.s32.totalorder %v471, 1
    %vm473 = vmand %vm468, %vm472
    %v474 = vsel %vm473, 1, 0
    %v475 = vcvt.s32.f32 %v474
    %v476 = vadd.f32 %v464, %v475
    %477 = vset.pattern.permute.xlu0 11
    %478 = vperm.xlu0 %477, %v344
    %v479 = vpop.permute.xlu0 %478
    %vm480 = vcmp.eq.s32.totalorder %v479, %v102
    %481 = vset.pattern.permute.xlu0 6
    %482 = vperm.xlu0 %481, %v279
    %v483 = vpop.permute.xlu0 %482
    %vm484 = vcmp.eq.s32.totalorder %v483, 1
    %vm485 = vmand %vm480, %vm484
    %v486 = vsel %vm485, 1, 0
    %v487 = vcvt.s32.f32 %v486
    %v488 = vadd.f32 %v476, %v487
    %489 = vset.pattern.permute.xlu0 12
    %490 = vperm.xlu0 %489, %v344
    %v491 = vpop.permute.xlu0 %490
    %vm492 = vcmp.eq.s32.totalorder %v491, %v102
    %493 = vset.pattern.permute.xlu0 6
    %494 = vperm.xlu0 %493, %v293
    %v495 = vpop.permute.xlu0 %494
    %vm496 = vcmp.eq.s32.totalorder %v495, 1
    %vm497 = vmand %vm492, %vm496
    %v498 = vsel %vm497, 1, 0
    %v499 = vcvt.s32.f32 %v498
    %v500 = vadd.f32 %v488, %v499
    %501 = vset.pattern.permute.xlu0 13
    %502 = vperm.xlu0 %501, %v344
    %v503 = vpop.permute.xlu0 %502
    %vm504 = vcmp.eq.s32.totalorder %v503, %v102
    %505 = vset.pattern.permute.xlu0 6
    %506 = vperm.xlu0 %505, %v307
    %v507 = vpop.permute.xlu0 %506
    %vm508 = vcmp.eq.s32.totalorder %v507, 1
    %vm509 = vmand %vm504, %vm508
    %v510 = vsel %vm509, 1, 0
    %v511 = vcvt.s32.f32 %v510
    %v512 = vadd.f32 %v500, %v511
    %513 = vset.pattern.permute.xlu0 14
    %514 = vperm.xlu0 %513, %v344
    %v515 = vpop.permute.xlu0 %514
    %vm516 = vcmp.eq.s32.totalorder %v515, %v102
    %517 = vset.pattern.permute.xlu0 6
    %518 = vperm.xlu0 %517, %v321
    %v519 = vpop.permute.xlu0 %518
    %vm520 = vcmp.eq.s32.totalorder %v519, 1
    %vm521 = vmand %vm516, %vm520
    %v522 = vsel %vm521, 1, 0
    %v523 = vcvt.s32.f32 %v522
    %v524 = vadd.f32 %v512, %v523
    %525 = vset.pattern.permute.xlu0 15
    %526 = vperm.xlu0 %525, %v344
    %v527 = vpop.permute.xlu0 %526
    %vm528 = vcmp.eq.s32.totalorder %v527, %v102
    %529 = vset.pattern.permute.xlu0 6
    %530 = vperm.xlu0 %529, %v335
    %v531 = vpop.permute.xlu0 %530
    %vm532 = vcmp.eq.s32.totalorder %v531, 1
    %vm533 = vmand %vm528, %vm532
    %v534 = vsel %vm533, 1, 0
    %v535 = vcvt.s32.f32 %v534
    %v536 = vadd.f32 %v524, %v535
    %v537 = vcvt.s32.f32 %v100
    %v538 = vmax.f32 %v537, 1e-09
    %v539 = vrcp.pop %v538
    %v540 = vmul.f32 1.0, %v539
    %541 = vmatprep.subr.mxu0 0.0
    %542 = vmatpush1.msra.mxu0 %v118
    %543 = vmatprep.subr.mxu0 0.0
    %544 = vmatpush1.msra.mxu0 %v117
    %545 = vmatprep.subr.mxu0 0.0
    %546 = vmatpush1.msra.mxu0 %v116
    %547 = vmatprep.subr.mxu0 0.0
    %548 = vmatpush1.msra.mxu0 %v115
    %549 = vmatprep.subr.mxu0 0.0
    %550 = vmatpush1.msra.mxu0 %v114
    %551 = vmatprep.subr.mxu0 0.0
    %552 = vmatpush1.msra.mxu0 %v113
    %553 = vmatprep.subr.mxu0 0.0
    %554 = vmatpush1.msra.mxu0 %v112
    %555 = vmatprep.subr.mxu0 0.0
    %556 = vmatpush1.msra.mxu0 %v111
    %557 = vmatprep.subr.mxu0 0.0
    %558 = vmatpush1.msra.mxu0 %v110
    %559 = vmatprep.subr.mxu0 0.0
    %560 = vmatpush1.msra.mxu0 %v109
    %561 = vmatprep.subr.mxu0 0.0
    %562 = vmatpush1.msra.mxu0 %v108
    %563 = vmatprep.subr.mxu0 0.0
    %564 = vmatpush1.msra.mxu0 %v107
    %565 = vmatprep.subr.mxu0 0.0
    %566 = vmatpush1.msra.mxu0 %v106
    %567 = vmatprep.subr.mxu0 0.0
    %568 = vmatpush1.msra.mxu0 %v105
    %569 = vmatprep.subr.mxu0 0.0
    %570 = vmatpush1.msra.mxu0 %v104
    %571 = vmatprep.subr.mxu0 0.0
    %572 = vmatpush1.msra.mxu0 %v103
    %573 = vmatprep.subr.mxu0 0.0
    %574 = vmatpush2.msra.mxu0 0.0
    %575 = vmatprep.subr.mxu0 0.0
    %576 = vmatpush2.msra.mxu0 0.0
    %577 = vmatprep.subr.mxu0 0.0
    %578 = vmatpush2.msra.mxu0 0.0
    %579 = vmatprep.subr.mxu0 0.0
    %580 = vmatpush2.msra.mxu0 0.0
    %581 = vmatprep.subr.mxu0 0.0
    %582 = vmatpush2.msra.mxu0 0.0
    %583 = vmatprep.subr.mxu0 0.0
    %584 = vmatpush2.msra.mxu0 0.0
    %585 = vmatprep.subr.mxu0 0.0
    %586 = vmatpush2.msra.mxu0 0.0
    %587 = vmatprep.subr.mxu0 0.0
    %588 = vmatpush2.msra.mxu0 0.0
    %589 = vmatprep.subr.mxu0 0.0
    %590 = vmatpush2.msra.mxu0 0.0
    %591 = vmatprep.subr.mxu0 0.0
    %592 = vmatpush2.msra.mxu0 0.0
    %593 = vmatprep.subr.mxu0 0.0
    %594 = vmatpush2.msra.mxu0 0.0
    %595 = vmatprep.subr.mxu0 0.0
    %596 = vmatpush2.msra.mxu0 0.0
    %597 = vmatprep.subr.mxu0 0.0
    %598 = vmatpush2.msra.mxu0 0.0
    %599 = vmatprep.subr.mxu0 0.0
    %600 = vmatpush2.msra.mxu0 0.0
    %601 = vmatprep.subr.mxu0 0.0
    %602 = vmatpush2.msra.mxu0 0.0
    %603 = vmatprep.subr.mxu0 0.0
    %604 = vmatpush2.msra.mxu0 0.0
    %605 = vmatprep.mubr.f32.mxu0 0.0
    %606 = vmatmul.mubr.f32.gmra.mxu0 %v343
    %v607 = vpop.f32.mrf.mxu0
    %v608 = vadd.f32 0.0, %v607
    %v609 = vpop.f32.mrf.mxu0
    %610 = vdwg.mxu0
    %612 = vset.pattern.permute.xlu0 5
    %613 = vperm.xlu0 %612, %v540
    %v614 = vpop.permute.xlu0 %613
    %v616 = vmul.f32 %v608, %v614
    %617 = vmatprep.subr.mxu0 0.0
    %618 = vmatpush1.msra.mxu0 %v118
    %619 = vmatprep.subr.mxu0 0.0
    %620 = vmatpush1.msra.mxu0 %v117
    %621 = vmatprep.subr.mxu0 0.0
    %622 = vmatpush1.msra.mxu0 %v116
    %623 = vmatprep.subr.mxu0 0.0
    %624 = vmatpush1.msra.mxu0 %v115
    %625 = vmatprep.subr.mxu0 0.0
    %626 = vmatpush1.msra.mxu0 %v114
    %627 = vmatprep.subr.mxu0 0.0
    %628 = vmatpush1.msra.mxu0 %v113
    %629 = vmatprep.subr.mxu0 0.0
    %630 = vmatpush1.msra.mxu0 %v112
    %631 = vmatprep.subr.mxu0 0.0
    %632 = vmatpush1.msra.mxu0 %v111
    %633 = vmatprep.subr.mxu0 0.0
    %634 = vmatpush1.msra.mxu0 %v110
    %635 = vmatprep.subr.mxu0 0.0
    %636 = vmatpush1.msra.mxu0 %v109
    %637 = vmatprep.subr.mxu0 0.0
    %638 = vmatpush1.msra.mxu0 %v108
    %639 = vmatprep.subr.mxu0 0.0
    %640 = vmatpush1.msra.mxu0 %v107
    %641 = vmatprep.subr.mxu0 0.0
    %642 = vmatpush1.msra.mxu0 %v106
    %643 = vmatprep.subr.mxu0 0.0
    %644 = vmatpush1.msra.mxu0 %v105
    %645 = vmatprep.subr.mxu0 0.0
    %646 = vmatpush1.msra.mxu0 %v104
    %647 = vmatprep.subr.mxu0 0.0
    %648 = vmatpush1.msra.mxu0 %v103
    %649 = vmatprep.subr.mxu0 0.0
    %650 = vmatpush2.msra.mxu0 0.0
    %651 = vmatprep.subr.mxu0 0.0
    %652 = vmatpush2.msra.mxu0 0.0
    %653 = vmatprep.subr.mxu0 0.0
    %654 = vmatpush2.msra.mxu0 0.0
    %655 = vmatprep.subr.mxu0 0.0
    %656 = vmatpush2.msra.mxu0 0.0
    %657 = vmatprep.subr.mxu0 0.0
    %658 = vmatpush2.msra.mxu0 0.0
    %659 = vmatprep.subr.mxu0 0.0
    %660 = vmatpush2.msra.mxu0 0.0
    %661 = vmatprep.subr.mxu0 0.0
    %662 = vmatpush2.msra.mxu0 0.0
    %663 = vmatprep.subr.mxu0 0.0
    %664 = vmatpush2.msra.mxu0 0.0
    %665 = vmatprep.subr.mxu0 0.0
    %666 = vmatpush2.msra.mxu0 0.0
    %667 = vmatprep.subr.mxu0 0.0
    %668 = vmatpush2.msra.mxu0 0.0
    %669 = vmatprep.subr.mxu0 0.0
    %670 = vmatpush2.msra.mxu0 0.0
    %671 = vmatprep.subr.mxu0 0.0
    %672 = vmatpush2.msra.mxu0 0.0
    %673 = vmatprep.subr.mxu0 0.0
    %674 = vmatpush2.msra.mxu0 0.0
    %675 = vmatprep.subr.mxu0 0.0
    %676 = vmatpush2.msra.mxu0 0.0
    %677 = vmatprep.subr.mxu0 0.0
    %678 = vmatpush2.msra.mxu0 0.0
    %679 = vmatprep.subr.mxu0 0.0
    %680 = vmatpush2.msra.mxu0 0.0
    %681 = vmatprep.mubr.f32.mxu0 0.0
    %682 = vmatmul.mubr.f32.gmra.mxu0 %v536
    %v683 = vpop.f32.mrf.mxu0
    %v684 = vadd.f32 0.0, %v683
    %v685 = vpop.f32.mrf.mxu0
    %686 = vdwg.mxu0
    %687 = vset.pattern.permute.xlu0 6
    %688 = vperm.xlu0 %687, %v540
    %v689 = vpop.permute.xlu0 %688
    %v691 = vmul.f32 %v684, %v689
    %692 = vset.pattern.permute.xlu0 0
    %693 = vperm.xlu0 %692, %v100
    %v694 = vpop.permute.xlu0 %693
    %vm695 = vcmp.eq.s32.totalorder %v694, %v102
    %v696 = vsel %vm695, 1, 0
    %v697 = vcvt.s32.f32 %v696
    %698 = vset.pattern.permute.xlu0 1
    %699 = vperm.xlu0 %698, %v100
    %v700 = vpop.permute.xlu0 %699
    %vm701 = vcmp.eq.s32.totalorder %v700, %v102
    %v702 = vsel %vm701, 1, 0
    %v703 = vcvt.s32.f32 %v702
    %704 = vset.pattern.permute.xlu0 2
    %705 = vperm.xlu0 %704, %v100
    %v706 = vpop.permute.xlu0 %705
    %vm707 = vcmp.eq.s32.totalorder %v706, %v102
    %v708 = vsel %vm707, 1, 0
    %v709 = vcvt.s32.f32 %v708
    %710 = vset.pattern.permute.xlu0 3
    %711 = vperm.xlu0 %710, %v100
    %v712 = vpop.permute.xlu0 %711
    %vm713 = vcmp.eq.s32.totalorder %v712, %v102
    %v714 = vsel %vm713, 1, 0
    %v715 = vcvt.s32.f32 %v714
    %v716 = vadd.f32 %v709, %v715
    %717 = vset.pattern.permute.xlu0 4
    %718 = vperm.xlu0 %717, %v100
    %v719 = vpop.permute.xlu0 %718
    %vm720 = vcmp.eq.s32.totalorder %v719, %v102
    %v721 = vsel %vm720, 1, 0
    %v722 = vcvt.s32.f32 %v721
    %v723 = vadd.f32 %v716, %v722
    %v724 = vld [vmem:[#allocation10] sm:$0xff]
    %v725 = vld [vmem:[#allocation10 + $0x8] sm:$0xff]
    %v726 = vld [vmem:[#allocation10 + $0x10] sm:$0xff]
    %v727 = vld [vmem:[#allocation10 + $0x18] sm:$0xff]
    %v728 = vld [vmem:[#allocation10 + $0x20] sm:$0xff]
    %v729 = vld [vmem:[#allocation10 + $0x28] sm:$0xff]
    %v730 = vld [vmem:[#allocation10 + $0x30] sm:$0xff]
    %v731 = vld [vmem:[#allocation10 + $0x38] sm:$0xff]
    %v732 = vld [vmem:[#allocation10 + $0x40] sm:$0xff]
    %v733 = vld [vmem:[#allocation10 + $0x48] sm:$0xff]
    %v734 = vld [vmem:[#allocation10 + $0x50] sm:$0xff]
    %v735 = vld [vmem:[#allocation10 + $0x58] sm:$0xff]
    %v736 = vld [vmem:[#allocation10 + $0x60] sm:$0xff]
    %v737 = vld [vmem:[#allocation10 + $0x68] sm:$0xff]
    %v738 = vld [vmem:[#allocation10 + $0x70] sm:$0xff]
    %v739 = vld [vmem:[#allocation10 + $0x78] sm:$0xff]
    %v740 = vld [vmem:[#allocation11] sm:$0xff]
    %v741 = vld [vmem:[#allocation11 + $0x8] sm:$0xff]
    %v742 = vld [vmem:[#allocation11 + $0x10] sm:$0xff]
    %v743 = vld [vmem:[#allocation11 + $0x18] sm:$0xff]
    %v744 = vld [vmem:[#allocation11 + $0x20] sm:$0xff]
    %v745 = vld [vmem:[#allocation11 + $0x28] sm:$0xff]
    %v746 = vld [vmem:[#allocation11 + $0x30] sm:$0xff]
    %v747 = vld [vmem:[#allocation11 + $0x38] sm:$0xff]
    %v748 = vld [vmem:[#allocation11 + $0x40] sm:$0xff]
    %v749 = vld [vmem:[#allocation11 + $0x48] sm:$0xff]
    %v750 = vld [vmem:[#allocation11 + $0x50] sm:$0xff]
    %v751 = vld [vmem:[#allocation11 + $0x58] sm:$0xff]
    %v752 = vld [vmem:[#allocation11 + $0x60] sm:$0xff]
    %v753 = vld [vmem:[#allocation11 + $0x68] sm:$0xff]
    %v754 = vld [vmem:[#allocation11 + $0x70] sm:$0xff]
    %v755 = vld [vmem:[#allocation11 + $0x78] sm:$0xff]
    %756 = vmatprep.subr.mxu0 0.0
    %757 = vmatpush1.msra.mxu0 %v755
    %758 = vmatprep.subr.mxu0 0.0
    %759 = vmatpush1.msra.mxu0 %v754
    %760 = vmatprep.subr.mxu0 0.0
    %761 = vmatpush1.msra.mxu0 %v753
    %762 = vmatprep.subr.mxu0 0.0
    %763 = vmatpush1.msra.mxu0 %v752
    %764 = vmatprep.subr.mxu0 0.0
    %765 = vmatpush1.msra.mxu0 %v751
    %766 = vmatprep.subr.mxu0 0.0
    %767 = vmatpush1.msra.mxu0 %v750
    %768 = vmatprep.subr.mxu0 0.0
    %769 = vmatpush1.msra.mxu0 %v749
    %770 = vmatprep.subr.mxu0 0.0
    %771 = vmatpush1.msra.mxu0 %v748
    %772 = vmatprep.subr.mxu0 0.0
    %773 = vmatpush1.msra.mxu0 %v747
    %774 = vmatprep.subr.mxu0 0.0
    %775 = vmatpush1.msra.mxu0 %v746
    %776 = vmatprep.subr.mxu0 0.0
    %777 = vmatpush1.msra.mxu0 %v745
    %778 = vmatprep.subr.mxu0 0.0
    %779 = vmatpush1.msra.mxu0 %v744
    %780 = vmatprep.subr.mxu0 0.0
    %781 = vmatpush1.msra.mxu0 %v743
    %782 = vmatprep.subr.mxu0 0.0
    %783 = vmatpush1.msra.mxu0 %v742
    %784 = vmatprep.subr.mxu0 0.0
    %785 = vmatpush1.msra.mxu0 %v741
    %786 = vmatprep.subr.mxu0 0.0
    %787 = vmatpush1.msra.mxu0 %v740
    %788 = vmatprep.subr.mxu0 0.0
    %789 = vmatpush2.msra.mxu0 0.0
    %790 = vmatprep.subr.mxu0 0.0
    %791 = vmatpush2.msra.mxu0 0.0
    %792 = vmatprep.subr.mxu0 0.0
    %793 = vmatpush2.msra.mxu0 0.0
    %794 = vmatprep.subr.mxu0 0.0
    %795 = vmatpush2.msra.mxu0 0.0
    %796 = vmatprep.subr.mxu0 0.0
    %797 = vmatpush2.msra.mxu0 0.0
    %798 = vmatprep.subr.mxu0 0.0
    %799 = vmatpush2.msra.mxu0 0.0
    %800 = vmatprep.subr.mxu0 0.0
    %801 = vmatpush2.msra.mxu0 0.0
    %802 = vmatprep.subr.mxu0 0.0
    %803 = vmatpush2.msra.mxu0 0.0
    %804 = vmatprep.subr.mxu0 0.0
    %805 = vmatpush2.msra.mxu0 0.0
    %806 = vmatprep.subr.mxu0 0.0
    %807 = vmatpush2.msra.mxu0 0.0
    %808 = vmatprep.subr.mxu0 0.0
    %809 = vmatpush2.msra.mxu0 0.0
    %810 = vmatprep.subr.mxu0 0.0
    %811 = vmatpush2.msra.mxu0 0.0
    %812 = vmatprep.subr.mxu0 0.0
    %813 = vmatpush2.msra.mxu0 0.0
    %814 = vmatprep.subr.mxu0 0.0
    %815 = vmatpush2.msra.mxu0 0.0
    %816 = vmatprep.subr.mxu0 0.0
    %817 = vmatpush2.msra.mxu0 0.0
    %818 = vmatprep.subr.mxu0 0.0
    %819 = vmatpush2.msra.mxu0 0.0
    %820 = vmatprep.mubr.f32.mxu0 0.0
    %821 = vmatmul.mubr.f32.gmra.mxu0 %v723
    %v822 = vpop.f32.mrf.mxu0
    %v823 = vadd.f32 0.0, %v822
    %v824 = vpop.f32.mrf.mxu0
    %825 = vdwg.mxu0
    %826 = vmatprep.subr.mxu0 0.0
    %827 = vmatpush1.msra.mxu0 %v739
    %828 = vmatprep.subr.mxu0 0.0
    %829 = vmatpush1.msra.mxu0 %v738
    %830 = vmatprep.subr.mxu0 0.0
    %831 = vmatpush1.msra.mxu0 %v737
    %832 = vmatprep.subr.mxu0 0.0
    %833 = vmatpush1.msra.mxu0 %v736
    %834 = vmatprep.subr.mxu0 0.0
    %835 = vmatpush1.msra.mxu0 %v735
    %836 = vmatprep.subr.mxu0 0.0
    %837 = vmatpush1.msra.mxu0 %v734
    %838 = vmatprep.subr.mxu0 0.0
    %839 = vmatpush1.msra.mxu0 %v733
    %840 = vmatprep.subr.mxu0 0.0
    %841 = vmatpush1.msra.mxu0 %v732
    %842 = vmatprep.subr.mxu0 0.0
    %843 = vmatpush1.msra.mxu0 %v731
    %844 = vmatprep.subr.mxu0 0.0
    %845 = vmatpush1.msra.mxu0 %v730
    %846 = vmatprep.subr.mxu0 0.0
    %847 = vmatpush1.msra.mxu0 %v729
    %848 = vmatprep.subr.mxu0 0.0
    %849 = vmatpush1.msra.mxu0 %v728
    %850 = vmatprep.subr.mxu0 0.0
    %851 = vmatpush1.msra.mxu0 %v727
    %852 = vmatprep.subr.mxu0 0.0
    %853 = vmatpush1.msra.mxu0 %v726
    %854 = vmatprep.subr.mxu0 0.0
    %855 = vmatpush1.msra.mxu0 %v725
    %856 = vmatprep.subr.mxu0 0.0
    %857 = vmatpush1.msra.mxu0 %v724
    %858 = vmatprep.subr.mxu0 0.0
    %859 = vmatpush2.msra.mxu0 0.0
    %860 = vmatprep.subr.mxu0 0.0
    %861 = vmatpush2.msra.mxu0 0.0
    %862 = vmatprep.subr.mxu0 0.0
    %863 = vmatpush2.msra.mxu0 0.0
    %864 = vmatprep.subr.mxu0 0.0
    %865 = vmatpush2.msra.mxu0 0.0
    %866 = vmatprep.subr.mxu0 0.0
    %867 = vmatpush2.msra.mxu0 0.0
    %868 = vmatprep.subr.mxu0 0.0
    %869 = vmatpush2.msra.mxu0 0.0
    %870 = vmatprep.subr.mxu0 0.0
    %871 = vmatpush2.msra.mxu0 0.0
    %872 = vmatprep.subr.mxu0 0.0
    %873 = vmatpush2.msra.mxu0 0.0
    %874 = vmatprep.subr.mxu0 0.0
    %875 = vmatpush2.msra.mxu0 0.0
    %876 = vmatprep.subr.mxu0 0.0
    %877 = vmatpush2.msra.mxu0 0.0
    %878 = vmatprep.subr.mxu0 0.0
    %879 = vmatpush2.msra.mxu0 0.0
    %880 = vmatprep.subr.mxu0 0.0
    %881 = vmatpush2.msra.mxu0 0.0
    %882 = vmatprep.subr.mxu0 0.0
    %883 = vmatpush2.msra.mxu0 0.0
    %884 = vmatprep.subr.mxu0 0.0
    %885 = vmatpush2.msra.mxu0 0.0
    %886 = vmatprep.subr.mxu0 0.0
    %887 = vmatpush2.msra.mxu0 0.0
    %888 = vmatprep.subr.mxu0 0.0
    %889 = vmatpush2.msra.mxu0 0.0
    %890 = vmatprep.mubr.f32.mxu0 0.0
    %891 = vmatmul.mubr.f32.gmra.mxu0 %v697
    %v892 = vpop.f32.mrf.mxu0
    %v893 = vadd.f32 %v616, %v892
    %v894 = vpop.f32.mrf.mxu0
    %895 = vdwg.mxu0
    %v896 = vmul.f32 %v893, 0.33333334
    %897 = vst [vmem:[#allocation13] sm:$0xff] %v896
    %v898 = vmul.f32 %v823, 0.33333334
    %s899 = scalar_lea.vmem [#allocation13], 8
    %900 = vst [vmem:[%s899] sm:$0xff] %v898
    %901 = vmatprep.subr.mxu0 0.0
    %902 = vmatpush1.msra.mxu0 %v739
    %903 = vmatprep.subr.mxu0 0.0
    %904 = vmatpush1.msra.mxu0 %v738
    %905 = vmatprep.subr.mxu0 0.0
    %906 = vmatpush1.msra.mxu0 %v737
    %907 = vmatprep.subr.mxu0 0.0
    %908 = vmatpush1.msra.mxu0 %v736
    %909 = vmatprep.subr.mxu0 0.0
    %910 = vmatpush1.msra.mxu0 %v735
    %911 = vmatprep.subr.mxu0 0.0
    %912 = vmatpush1.msra.mxu0 %v734
    %913 = vmatprep.subr.mxu0 0.0
    %914 = vmatpush1.msra.mxu0 %v733
    %915 = vmatprep.subr.mxu0 0.0
    %916 = vmatpush1.msra.mxu0 %v732
    %917 = vmatprep.subr.mxu0 0.0
    %918 = vmatpush1.msra.mxu0 %v731
    %919 = vmatprep.subr.mxu0 0.0
    %920 = vmatpush1.msra.mxu0 %v730
    %921 = vmatprep.subr.mxu0 0.0
    %922 = vmatpush1.msra.mxu0 %v729
    %923 = vmatprep.subr.mxu0 0.0
    %924 = vmatpush1.msra.mxu0 %v728
    %925 = vmatprep.subr.mxu0 0.0
    %926 = vmatpush1.msra.mxu0 %v727
    %927 = vmatprep.subr.mxu0 0.0
    %928 = vmatpush1.msra.mxu0 %v726
    %929 = vmatprep.subr.mxu0 0.0
    %930 = vmatpush1.msra.mxu0 %v725
    %931 = vmatprep.subr.mxu0 0.0
    %932 = vmatpush1.msra.mxu0 %v724
    %933 = vmatprep.subr.mxu0 0.0
    %934 = vmatpush2.msra.mxu0 0.0
    %935 = vmatprep.subr.mxu0 0.0
    %936 = vmatpush2.msra.mxu0 0.0
    %937 = vmatprep.subr.mxu0 0.0
    %938 = vmatpush2.msra.mxu0 0.0
    %939 = vmatprep.subr.mxu0 0.0
    %940 = vmatpush2.msra.mxu0 0.0
    %941 = vmatprep.subr.mxu0 0.0
    %942 = vmatpush2.msra.mxu0 0.0
    %943 = vmatprep.subr.mxu0 0.0
    %944 = vmatpush2.msra.mxu0 0.0
    %945 = vmatprep.subr.mxu0 0.0
    %946 = vmatpush2.msra.mxu0 0.0
    %947 = vmatprep.subr.mxu0 0.0
    %948 = vmatpush2.msra.mxu0 0.0
    %949 = vmatprep.subr.mxu0 0.0
    %950 = vmatpush2.msra.mxu0 0.0
    %951 = vmatprep.subr.mxu0 0.0
    %952 = vmatpush2.msra.mxu0 0.0
    %953 = vmatprep.subr.mxu0 0.0
    %954 = vmatpush2.msra.mxu0 0.0
    %955 = vmatprep.subr.mxu0 0.0
    %956 = vmatpush2.msra.mxu0 0.0
    %957 = vmatprep.subr.mxu0 0.0
    %958 = vmatpush2.msra.mxu0 0.0
    %959 = vmatprep.subr.mxu0 0.0
    %960 = vmatpush2.msra.mxu0 0.0
    %961 = vmatprep.subr.mxu0 0.0
    %962 = vmatpush2.msra.mxu0 0.0
    %963 = vmatprep.subr.mxu0 0.0
    %964 = vmatpush2.msra.mxu0 0.0
    %965 = vmatprep.mubr.f32.mxu0 0.0
    %966 = vmatmul.mubr.f32.gmra.mxu0 %v703
    %v967 = vpop.f32.mrf.mxu0
    %v968 = vadd.f32 %v691, %v967
    %v969 = vpop.f32.mrf.mxu0
    %970 = vdwg.mxu0
    %v971 = vmul.f32 %v968, 0.33333334
    %s972 = scalar_lea.vmem [#allocation13], 16
    %973 = vst [vmem:[%s972] sm:$0xff] %v971
    // Predicated region
    $region50: #{tpu_custom_call.1} parent=1 // pred_check
      _
    $region51: #{tpu_custom_call.1} parent=1 // pred_check_branch
      %975 = sbr.rel (0) target = $region53
    $region52: #{tpu_custom_call.1} parent=1 // pred_region
      %s977 = ssub.s32 384, 384
      %978 = vsyncadd [#allocation4], %s977
      %s979 = sshll.u32 [#allocation13], 4
      %s980 = int_to_ptr.vmem [resolvable:$true] %s979
      %985 = dma.vmem_to_hbm [thread:$0]  %s980, 384, %s6, [#allocation4], 128, 128, 8
    $region53: #{tpu_custom_call.1} parent=1 // pred_fallthru
      _
    // Predicated region
    $region54: #{tpu_custom_call.1} parent=1 // pred_check
      _
    $region55: #{tpu_custom_call.1} parent=1 // pred_check_branch
      %987 = sbr.rel (0) target = $region57
    $region56: #{tpu_custom_call.1} parent=1 // pred_region
      %988 = dma.done [#allocation4], 384
    $region57: #{tpu_custom_call.1} parent=1 // pred_fallthru
      _
    %989 = vsyncpa [#allocation3], 1
    %990 = vsyncpa [#allocation6], 1
    %991 = vsyncpa [#allocation9], 1
    %992 = vsyncpa [#allocation12], 1
    %993 = vsyncpa [#allocation4], 1

</llo_original>
